<compile_context>
chip_gen: v5e
topology: v5e:2x2
jax: 0.10.0
libtpu: 0.0.40
codegen_flags: <defaults>
</compile_context>

<pallas_src>
import jax
import jax.numpy as jnp
from jax.experimental import pallas as pl
from jax.experimental.pallas import tpu as pltpu


# ---------------------------------------------------------------------------
# Pallas kernels
# ---------------------------------------------------------------------------
def _conv3x3_bias_relu_kernel(xp_ref, w_ref, b_ref, o_ref):
    """Fused 3x3 conv + bias + ReLU for one H-tile of one batch element.

    xp_ref : (1, H+2, W+2, Cin)  padded activation, resident across H tiles
    w_ref  : (9*Cin, Cout)       HWIO weights flattened along (dh, dw, cin)
    b_ref  : (1, Cout)           f32 bias
    o_ref  : (1, TH*W, Cout)     output rows [i*TH, (i+1)*TH) flattened
    """
    wout = xp_ref.shape[2] - 2          # output width W
    rows = o_ref.shape[1]               # TH * W
    th = rows // wout                   # output rows handled by this tile
    r0 = pl.program_id(1) * th          # first output row of this tile

    # Build the im2col block directly from the VMEM-resident padded tile:
    # 9 shifted (TH, W, Cin) views concatenated on the channel (lane) axis.
    taps = []
    for dh in range(3):
        for dw in range(3):
            taps.append(xp_ref[0, pl.ds(r0 + dh, th), pl.ds(dw, wout), :])
    col = jnp.concatenate(taps, axis=-1).reshape(rows, w_ref.shape[0])

    # Single fused-K MXU matmul (bf16 x bf16 -> f32 accumulate), then
    # bias + ReLU in f32; one store, no scratch accumulator.
    acc = jnp.dot(col, w_ref[...], preferred_element_type=jnp.float32)
    y = acc + b_ref[...]
    o_ref[0] = jnp.maximum(y, 0.0).astype(o_ref.dtype)


def _maxpool2x2_kernel(x_ref, o_ref):
    """2x2/2 max pool on an H tile.

    x_ref : (1, TH, Wo, 2*C)   horizontal window pair folded into the lane axis
    o_ref : (1, TH//2, Wo, C)
    """
    c = o_ref.shape[-1]
    th = x_ref.shape[1]
    wo = x_ref.shape[2]
    x = x_ref[...]
    # Horizontal (W-direction) max: the two window columns are the two
    # C-sized halves of the lane axis.
    m = jnp.maximum(x[..., :c], x[..., c:])            # (1, TH, Wo, C)
    # Vertical (H-direction) max: pair consecutive rows (major-dim split).
    m = m.reshape(1, th // 2, 2, wo, c)
    o_ref[...] = jnp.maximum(m[:, :, 0], m[:, :, 1])   # (1, TH//2, Wo, C)


# ---------------------------------------------------------------------------
# Wrappers
# ---------------------------------------------------------------------------
def _pick_row_tile(h, w, max_rows=256):
    """Largest divisor TH of h with TH*w <= max_rows and TH*w a multiple of 8
    (or the full h*w extent, which always satisfies the layout rule)."""
    for th in range(h, 0, -1):
        if h % th:
            continue
        rows = th * w
        if rows <= max_rows and (rows % 8 == 0 or th == h):
            return th
    return h


def conv3x3_relu(x, w, b):
    """x: (N, H, W, Cin) bf16 NHWC; w: (3, 3, Cin, Cout) bf16 HWIO; b: (Cout,) f32."""
    N, H, W, Cin = x.shape
    Cout = w.shape[-1]
    th = _pick_row_tile(H, W)
    rows = th * W
    n_h = H // th

    xp = jnp.pad(x, ((0, 0), (1, 1), (1, 1), (0, 0)))   # (N, H+2, W+2, Cin)
    w2 = w.reshape(9 * Cin, Cout)                        # (dh, dw, cin) flat
    b2 = b.reshape(1, Cout).astype(jnp.float32)

    out = pl.pallas_call(
        _conv3x3_bias_relu_kernel,
        out_shape=jax.ShapeDtypeStruct((N, H * W, Cout), x.dtype),
        grid_spec=pltpu.PrefetchScalarGridSpec(
            num_scalar_prefetch=0,
            grid=(N, n_h),
            in_specs=[
                # Full padded image for batch n; index constant along the
                # H-tile axis -> fetched once per batch element.
                pl.BlockSpec((1, H + 2, W + 2, Cin), lambda n, i: (n, 0, 0, 0)),
                pl.BlockSpec((9 * Cin, Cout), lambda n, i: (0, 0)),
                pl.BlockSpec((1, Cout), lambda n, i: (0, 0)),
            ],
            out_specs=pl.BlockSpec((1, rows, Cout), lambda n, i: (n, i, 0)),
        ),
        compiler_params=pltpu.CompilerParams(
            dimension_semantics=("parallel", "parallel"),
            # Modest, generation-safe scoped-VMEM budget (fits v7x's 64 MiB
            # with double-buffering headroom; working set here is < ~12 MiB).
            vmem_limit_bytes=32 * 1024 * 1024,
        ),
    )(xp, w2, b2)
    return out.reshape(N, H, W, Cout)


def _pick_even_tile(h, cap=16):
    for t in range(min(h, cap), 1, -1):
        if t % 2 == 0 and h % t == 0:
            return t
    return h


def maxpool2x2(x):
    """x: (N, H, W, C) NHWC -> (N, H//2, W//2, C); kernel=2, stride=2."""
    N, H, W, C = x.shape
    Ho, Wo = H // 2, W // 2
    # Free row-major reshape: fold each horizontal 2-window into the lane axis.
    xr = x.reshape(N, H, Wo, 2 * C)
    th = _pick_even_tile(H)
    return pl.pallas_call(
        _maxpool2x2_kernel,
        out_shape=jax.ShapeDtypeStruct((N, Ho, Wo, C), x.dtype),
        grid_spec=pltpu.PrefetchScalarGridSpec(
            num_scalar_prefetch=0,
            grid=(N, H // th),
            in_specs=[pl.BlockSpec((1, th, Wo, 2 * C), lambda n, i: (n, i, 0, 0))],
            out_specs=pl.BlockSpec((1, th // 2, Wo, C), lambda n, i: (n, i, 0, 0)),
        ),
        compiler_params=pltpu.CompilerParams(
            dimension_semantics=("parallel", "parallel"),
        ),
    )(xr)


# ---------------------------------------------------------------------------
# VGG19 definition (torchvision `features` layout)
# ---------------------------------------------------------------------------
VGG19_CFG = [64, 64, "M", 128, 128, "M", 256, 256, 256, 256, "M",
             512, 512, 512, 512, "M", 512, 512, 512, 512, "M"]
NEEDED_LAYERS = {1, 6, 11, 20, 29, 31}  # all are ReLU feature indices


def init_params(key):
    params = []
    cin = 3
    for v in VGG19_CFG:
        if v == "M":
            params.append(None)
        else:
            key, kw, kb = jax.random.split(key, 3)
            fan_in = cin * 9
            w = (jax.random.normal(kw, (3, 3, cin, v), jnp.float32)
                 * jnp.sqrt(2.0 / fan_in)).astype(jnp.bfloat16)
            b = jax.random.normal(kb, (v,), jnp.float32) * 0.01
            params.append((w, b))
            cin = v
    return params


def vgg19_forward(x_nchw, params):
    """Mirrors VGG19.forward: returns (results[:-1], list(results[-1])), NCHW."""
    x = jnp.transpose(x_nchw, (0, 2, 3, 1)).astype(jnp.bfloat16)  # -> NHWC bf16
    results = []
    idx = 0  # index into the torchvision `features` ModuleList
    for p in params:
        if p is None:                       # MaxPool2d(2, 2)
            x = maxpool2x2(x)
            if idx in NEEDED_LAYERS:
                results.append(x)
            idx += 1
        else:                               # Conv2d(3x3, pad=1) + ReLU fused
            w, b = p
            x = conv3x3_relu(x, w, b)
            if (idx + 1) in NEEDED_LAYERS:  # the ReLU's feature index
                results.append(x)
            idx += 2

    # Back to NCHW f32 for the external (PyTorch-matching) interface.
    results = [jnp.transpose(r, (0, 3, 1, 2)).astype(jnp.float32)
               for r in results]
    return results[:-1], list(results[-1])


# ---------------------------------------------------------------------------
if __name__ == "__main__":
    key = jax.random.PRNGKey(0)
    k_x, k_p = jax.random.split(key)

    # Small deterministic input consistent with VGG19 (3 input channels,
    # spatial 32 so that all 5 pools in `features` stay valid).
    x = jax.random.normal(k_x, (2, 3, 32, 32), jnp.float32)
    params = init_params(k_p)

    # --- light numerical sanity checks of both kernels vs pure JAX ----------
    x_nhwc = jnp.transpose(x, (0, 2, 3, 1)).astype(jnp.bfloat16)
    w0, b0 = params[0]
    ref = jax.lax.conv_general_dilated(
        x_nhwc.astype(jnp.float32), w0.astype(jnp.float32),
        window_strides=(1, 1), padding="SAME",
        dimension_numbers=("NHWC", "HWIO", "NHWC"))
    ref = jnp.maximum(ref + b0, 0.0)
    got = conv3x3_relu(x_nhwc, w0, b0).astype(jnp.float32)
    assert jnp.allclose(got, ref, rtol=5e-2, atol=5e-2), "conv kernel mismatch"

    pool_ref = jnp.maximum(
        jnp.maximum(x_nhwc[:, 0::2, 0::2, :], x_nhwc[:, 0::2, 1::2, :]),
        jnp.maximum(x_nhwc[:, 1::2, 0::2, :], x_nhwc[:, 1::2, 1::2, :]))
    assert jnp.array_equal(maxpool2x2(x_nhwc), pool_ref), "maxpool mismatch"

    # --- full forward --------------------------------------------------------
    fwd = jax.jit(vgg19_forward)
    feats, last_per_sample = fwd(x, params)
    jax.block_until_ready((feats, last_per_sample))

    # Shape sanity checks (PyTorch NCHW convention).
    expected = [(2, 64, 32, 32), (2, 128, 16, 16), (2, 256, 8, 8),
                (2, 512, 4, 4), (2, 512, 2, 2)]
    assert [tuple(f.shape) for f in feats] == expected
    assert len(last_per_sample) == 2
    assert all(tuple(t.shape) == (512, 2, 2) for t in last_per_sample)
    assert all(bool(jnp.all(jnp.isfinite(f))) for f in feats)

    print("KERNEL_OK")
</pallas_src>

<mosaic_0001>
module attributes {stable_mosaic.version = 11 : i64} {
  func.func @_conv3x3_bias_relu_kernel(%arg0: i32, %arg1: i32, %arg2: memref<1x34x34x3xbf16, #tpu.memory_space<vmem>>, %arg3: memref<27x64xbf16, #tpu.memory_space<vmem>>, %arg4: memref<1x64xf32, #tpu.memory_space<vmem>>, %arg5: memref<1x256x64xbf16, #tpu.memory_space<vmem>>) attributes {dimension_semantics = [#tpu.dimension_semantics<parallel>, #tpu.dimension_semantics<parallel>], iteration_bounds = array<i64: 2, 4>, scalar_prefetch = 0 : i64, scratch_operands = 0 : i64, tpu.core_type = #tpu.core_type<tc>, window_params = [{transform_indices = @transform_0, window_bounds = array<i64: 1, 34, 34, 3>}, {pipeline_mode = #tpu.pipeline_mode<synchronous>, transform_indices = @transform_1, window_bounds = array<i64: 27, 64>}, {pipeline_mode = #tpu.pipeline_mode<synchronous>, transform_indices = @transform_2, window_bounds = array<i64: 1, 64>}, {transform_indices = @transform_3, window_bounds = array<i64: 1, 256, 64>}]} {
    %c8_i32 = arith.constant 8 : i32
    %0 = arith.muli %arg1, %c8_i32 : i32
    %c0_i32 = arith.constant 0 : i32
    %1 = arith.addi %0, %c0_i32 : i32
    %c0 = arith.constant 0 : index
    %2 = arith.index_cast %1 : i32 to index
    %c0_0 = arith.constant 0 : index
    %c0_1 = arith.constant 0 : index
    %3 = vector.load %arg2[%c0, %2, %c0_0, %c0_1] : memref<1x34x34x3xbf16, #tpu.memory_space<vmem>>, vector<1x8x32x3xbf16>
    %4 = vector.shape_cast %3 : vector<1x8x32x3xbf16> to vector<8x32x3xbf16>
    %c0_i32_2 = arith.constant 0 : i32
    %5 = arith.addi %0, %c0_i32_2 : i32
    %c0_3 = arith.constant 0 : index
    %6 = arith.index_cast %5 : i32 to index
    %c1 = arith.constant 1 : index
    %c0_4 = arith.constant 0 : index
    %7 = vector.load %arg2[%c0_3, %6, %c1, %c0_4] : memref<1x34x34x3xbf16, #tpu.memory_space<vmem>>, vector<1x8x32x3xbf16>
    %8 = vector.shape_cast %7 : vector<1x8x32x3xbf16> to vector<8x32x3xbf16>
    %c0_i32_5 = arith.constant 0 : i32
    %9 = arith.addi %0, %c0_i32_5 : i32
    %c0_6 = arith.constant 0 : index
    %10 = arith.index_cast %9 : i32 to index
    %c2 = arith.constant 2 : index
    %c0_7 = arith.constant 0 : index
    %11 = vector.load %arg2[%c0_6, %10, %c2, %c0_7] : memref<1x34x34x3xbf16, #tpu.memory_space<vmem>>, vector<1x8x32x3xbf16>
    %12 = vector.shape_cast %11 : vector<1x8x32x3xbf16> to vector<8x32x3xbf16>
    %c1_i32 = arith.constant 1 : i32
    %13 = arith.addi %0, %c1_i32 : i32
    %c0_8 = arith.constant 0 : index
    %14 = arith.index_cast %13 : i32 to index
    %c0_9 = arith.constant 0 : index
    %c0_10 = arith.constant 0 : index
    %15 = vector.load %arg2[%c0_8, %14, %c0_9, %c0_10] : memref<1x34x34x3xbf16, #tpu.memory_space<vmem>>, vector<1x8x32x3xbf16>
    %16 = vector.shape_cast %15 : vector<1x8x32x3xbf16> to vector<8x32x3xbf16>
    %c1_i32_11 = arith.constant 1 : i32
    %17 = arith.addi %0, %c1_i32_11 : i32
    %c0_12 = arith.constant 0 : index
    %18 = arith.index_cast %17 : i32 to index
    %c1_13 = arith.constant 1 : index
    %c0_14 = arith.constant 0 : index
    %19 = vector.load %arg2[%c0_12, %18, %c1_13, %c0_14] : memref<1x34x34x3xbf16, #tpu.memory_space<vmem>>, vector<1x8x32x3xbf16>
    %20 = vector.shape_cast %19 : vector<1x8x32x3xbf16> to vector<8x32x3xbf16>
    %c1_i32_15 = arith.constant 1 : i32
    %21 = arith.addi %0, %c1_i32_15 : i32
    %c0_16 = arith.constant 0 : index
    %22 = arith.index_cast %21 : i32 to index
    %c2_17 = arith.constant 2 : index
    %c0_18 = arith.constant 0 : index
    %23 = vector.load %arg2[%c0_16, %22, %c2_17, %c0_18] : memref<1x34x34x3xbf16, #tpu.memory_space<vmem>>, vector<1x8x32x3xbf16>
    %24 = vector.shape_cast %23 : vector<1x8x32x3xbf16> to vector<8x32x3xbf16>
    %c2_i32 = arith.constant 2 : i32
    %25 = arith.addi %0, %c2_i32 : i32
    %c0_19 = arith.constant 0 : index
    %26 = arith.index_cast %25 : i32 to index
    %c0_20 = arith.constant 0 : index
    %c0_21 = arith.constant 0 : index
    %27 = vector.load %arg2[%c0_19, %26, %c0_20, %c0_21] : memref<1x34x34x3xbf16, #tpu.memory_space<vmem>>, vector<1x8x32x3xbf16>
    %28 = vector.shape_cast %27 : vector<1x8x32x3xbf16> to vector<8x32x3xbf16>
    %c2_i32_22 = arith.constant 2 : i32
    %29 = arith.addi %0, %c2_i32_22 : i32
    %c0_23 = arith.constant 0 : index
    %30 = arith.index_cast %29 : i32 to index
    %c1_24 = arith.constant 1 : index
    %c0_25 = arith.constant 0 : index
    %31 = vector.load %arg2[%c0_23, %30, %c1_24, %c0_25] : memref<1x34x34x3xbf16, #tpu.memory_space<vmem>>, vector<1x8x32x3xbf16>
    %32 = vector.shape_cast %31 : vector<1x8x32x3xbf16> to vector<8x32x3xbf16>
    %c2_i32_26 = arith.constant 2 : i32
    %33 = arith.addi %0, %c2_i32_26 : i32
    %c0_27 = arith.constant 0 : index
    %34 = arith.index_cast %33 : i32 to index
    %c2_28 = arith.constant 2 : index
    %c0_29 = arith.constant 0 : index
    %35 = vector.load %arg2[%c0_27, %34, %c2_28, %c0_29] : memref<1x34x34x3xbf16, #tpu.memory_space<vmem>>, vector<1x8x32x3xbf16>
    %36 = vector.shape_cast %35 : vector<1x8x32x3xbf16> to vector<8x32x3xbf16>
    %37 = tpu.concatenate %4, %8, %12, %16, %20, %24, %28, %32, %36 in 2 : vector<8x32x3xbf16>, vector<8x32x3xbf16>, vector<8x32x3xbf16>, vector<8x32x3xbf16>, vector<8x32x3xbf16>, vector<8x32x3xbf16>, vector<8x32x3xbf16>, vector<8x32x3xbf16>, vector<8x32x3xbf16> -> vector<8x32x27xbf16>
    %38 = vector.shape_cast %37 : vector<8x32x27xbf16> to vector<256x27xbf16>
    %c0_30 = arith.constant 0 : index
    %c0_31 = arith.constant 0 : index
    %39 = vector.load %arg3[%c0_30, %c0_31] : memref<27x64xbf16, #tpu.memory_space<vmem>>, vector<27x64xbf16>
    %cst = arith.constant dense<0.000000e+00> : vector<256x64xf32>
    %40 = tpu.matmul %38, %39, %cst {dimension_numbers = #tpu.dot_dimension_numbers<[1], [0], [0], [1], [0, 0, 1, 1], [], []>} : vector<256x27xbf16>, vector<27x64xbf16>, vector<256x64xf32> -> vector<256x64xf32>
    %c0_32 = arith.constant 0 : index
    %c0_33 = arith.constant 0 : index
    %41 = vector.load %arg4[%c0_32, %c0_33] : memref<1x64xf32, #tpu.memory_space<vmem>>, vector<1x64xf32>
    %42 = vector.broadcast %41 : vector<1x64xf32> to vector<256x64xf32>
    %43 = arith.addf %40, %42 : vector<256x64xf32>
    %cst_34 = arith.constant 0.000000e+00 : f32
    %44 = vector.broadcast %cst_34 : f32 to vector<256x64xf32>
    %45 = arith.maximumf %43, %44 : vector<256x64xf32>
    %46 = arith.truncf %45 : vector<256x64xf32> to vector<256x64xbf16>
    %c0_35 = arith.constant 0 : index
    %c0_36 = arith.constant 0 : index
    %c0_37 = arith.constant 0 : index
    %47 = vector.load %arg5[%c0_35, %c0_36, %c0_37] : memref<1x256x64xbf16, #tpu.memory_space<vmem>>, vector<1x256x64xbf16>
    %48 = vector.shape_cast %47 : vector<1x256x64xbf16> to vector<256x64xbf16>
    %49 = vector.shape_cast %46 : vector<256x64xbf16> to vector<1x256x64xbf16>
    tpu.vector_store %arg5[%c0_35, %c0_36, %c0_37], %49 {strides = array<i32>} : memref<1x256x64xbf16, #tpu.memory_space<vmem>>, vector<1x256x64xbf16>,
    return
  }
  func.func @transform_0(%arg0: i32, %arg1: i32) -> (i32, i32, i32, i32) {
    %c0_i32 = arith.constant 0 : i32
    %c0_i32_0 = arith.constant 0 : i32
    %c0_i32_1 = arith.constant 0 : i32
    %c0_i32_2 = arith.constant 0 : i32
    return %arg0, %c0_i32, %c0_i32_0, %c0_i32_1 : i32, i32, i32, i32
  }
  func.func @transform_1(%arg0: i32, %arg1: i32) -> (i32, i32) {
    %c0_i32 = arith.constant 0 : i32
    %c0_i32_0 = arith.constant 0 : i32
    %c0_i32_1 = arith.constant 0 : i32
    return %c0_i32, %c0_i32_0 : i32, i32
  }
  func.func @transform_2(%arg0: i32, %arg1: i32) -> (i32, i32) {
    %c0_i32 = arith.constant 0 : i32
    %c0_i32_0 = arith.constant 0 : i32
    %c0_i32_1 = arith.constant 0 : i32
    return %c0_i32, %c0_i32_0 : i32, i32
  }
  func.func @transform_3(%arg0: i32, %arg1: i32) -> (i32, i32, i32) {
    %c0_i32 = arith.constant 0 : i32
    %c0_i32_0 = arith.constant 0 : i32
    return %arg0, %arg1, %c0_i32 : i32, i32, i32
  }
}

</mosaic_0001>

<llo_original>
// kernel: tpu_custom_call.1
$region0: #{tpu_custom_call.1}
  #allocation0 [shape = 'u32[]', space=smem, size = 0x4, offset = 0x4, fixed_abs, tag = 'smem constant byte address 0x4 - core index']
  #allocation1 [shape = 'u32[72,128]{1,0:T(1,128)}', space=vmem, size = 0x9000, scoped, tag = 'internal scratch']
  %s0 = inlined_call_operand.vmem [shape: bf16[2,34,34,3], index: 0, kind: input, shape index: {}]
  %s1 = inlined_call_operand.vmem [shape: bf16[27,64], index: 1, kind: input, shape index: {}]
  %s2 = inlined_call_operand.vmem [shape: f32[1,64], index: 2, kind: input, shape index: {}]
  %s3 = inlined_call_operand.vmem [shape: bf16[2,1024,64], index: 3, kind: output, shape index: {}]
  %s4 = sld [smem:[#allocation0]]
  $region45: #{tpu_custom_call.1} parent=0
    _
  %s6 = ssub.s32 1, %s4
  %s7 = scalar_select 0, %s6, %s4
  loop: start=0, step=1, limit=10
  $region2: #{tpu_custom_call.1} parent=0 // loop_pre_header
    _
  $region3: #{tpu_custom_call.1} parent=0 // loop_header
    %s9 = sphi 0, %s13
    %p10 = scmp.ge.s32.totalorder %s9, 10
    %s16 = sphi 0, %s28
    %s17 = sphi 0, %s24
    %s18 = sphi 0, %s16
    %s19 = sphi 0, %s17
    %s20 = sphi 0, %s18
    %s21 = sphi 0, %s19
    %s31 = sphi 0, %s33
    %s34 = sphi 0, %s31
    %s35 = sphi 0, %s34
    %s51 = sphi 0, %s35
    %s55 = sphi 0, %s55
    %s57 = sphi 0, %s55
    %s58 = sphi 0, %s57
    %s72 = sphi 0, %s58
    %s76 = sphi 0, %s76
    %s78 = sphi 0, %s76
    %s79 = sphi 0, %s78
    %s93 = sphi 0, %s79
    %s101 = sphi 0, %s103
    %s104 = sphi 0, %s101
    %s105 = sphi 0, %s104
    %s121 = sphi 0, %s105
  $region4: #{tpu_custom_call.1} parent=0 // loop_header_branch
    %12 = sbr.rel (%p10) target = $region8
  $region5: #{tpu_custom_call.1} parent=0 // loop_body
    %s14 = ssub.s32 %s9, 1
    %s15 = ssub.s32 %s9, 2
    %s22 = sadd.s32 1, %s17
    %p23 = scmp.ge.s32.totalorder %s22, 4
    %s24 = scalar_select %p23, 0, %s22
    %s25 = sadd.s32 1, %s16
    %s26 = scalar_select %p23, %s25, %s16
    %p27 = scmp.ge.s32.totalorder %s26, 2
    %s28 = scalar_select %p27, 0, %s26
    %s29 = ssub.s32 %s16, %s28
    %p30 = scmp.eq.s32.totalorder %s29, 0
    %s32 = sadd.s32 %s31, 1
    %s33 = scalar_select %p30, %s31, %s32
    %p36 = pneg %p30
    %p37 = scmp.eq.s32.totalorder %s9, 7
    %p38 = por %p36, %p37
    %p39 = scmp.ne.s32.totalorder %s31, %s34
    %p40 = scmp.eq.s32.totalorder %s9, 0
    %p41 = por %p39, %p40
    %p42 = scmp.ne.s32.totalorder %s31, %s34
    %p43 = scmp.eq.s32.totalorder %s14, 7
    %p44 = por %p42, %p43
    %p45 = scmp.ne.s32.totalorder %s34, %s35
    %p46 = scmp.eq.s32.totalorder %s14, 0
    %p47 = por %p45, %p46
    %p48 = scmp.ne.s32.totalorder %s34, %s35
    %p49 = scmp.eq.s32.totalorder %s15, 7
    %p50 = por %p48, %p49
    %p52 = scmp.ne.s32.totalorder %s35, %s51
    %p53 = scmp.eq.s32.totalorder %s15, 0
    %p54 = por %p52, %p53
    %s56 = sadd.s32 %s55, 1
    %p59 = scmp.eq.s32.totalorder %s9, 7
    %p60 = scmp.ne.s32.totalorder %s55, %s57
    %p61 = scmp.eq.s32.totalorder %s9, 0
    %p62 = por %p60, %p61
    %p63 = scmp.ne.s32.totalorder %s55, %s57
    %p64 = scmp.eq.s32.totalorder %s14, 7
    %p65 = por %p63, %p64
    %p66 = scmp.ne.s32.totalorder %s57, %s58
    %p67 = scmp.eq.s32.totalorder %s14, 0
    %p68 = por %p66, %p67
    %p69 = scmp.ne.s32.totalorder %s57, %s58
    %p70 = scmp.eq.s32.totalorder %s15, 7
    %p71 = por %p69, %p70
    %p73 = scmp.ne.s32.totalorder %s58, %s72
    %p74 = scmp.eq.s32.totalorder %s15, 0
    %p75 = por %p73, %p74
    %s77 = sadd.s32 %s76, 1
    %p80 = scmp.eq.s32.totalorder %s9, 7
    %p81 = scmp.ne.s32.totalorder %s76, %s78
    %p82 = scmp.eq.s32.totalorder %s9, 0
    %p83 = por %p81, %p82
    %p84 = scmp.ne.s32.totalorder %s76, %s78
    %p85 = scmp.eq.s32.totalorder %s14, 7
    %p86 = por %p84, %p85
    %p87 = scmp.ne.s32.totalorder %s78, %s79
    %p88 = scmp.eq.s32.totalorder %s14, 0
    %p89 = por %p87, %p88
    %p90 = scmp.ne.s32.totalorder %s78, %s79
    %p91 = scmp.eq.s32.totalorder %s15, 7
    %p92 = por %p90, %p91
    %p94 = scmp.ne.s32.totalorder %s79, %s93
    %p95 = scmp.eq.s32.totalorder %s15, 0
    %p96 = por %p94, %p95
    %s97 = ssub.s32 %s16, %s28
    %s98 = ssub.s32 %s17, %s24
    %s99 = sor.u32 %s97, %s98
    %p100 = scmp.eq.s32.totalorder %s99, 0
    %s102 = sadd.s32 %s101, 1
    %s103 = scalar_select %p100, %s101, %s102
    %p106 = pneg %p100
    %p107 = scmp.eq.s32.totalorder %s9, 7
    %p108 = por %p106, %p107
    %p109 = scmp.ne.s32.totalorder %s101, %s104
    %p110 = scmp.eq.s32.totalorder %s9, 0
    %p111 = por %p109, %p110
    %p112 = scmp.ne.s32.totalorder %s101, %s104
    %p113 = scmp.eq.s32.totalorder %s14, 7
    %p114 = por %p112, %p113
    %p115 = scmp.ne.s32.totalorder %s104, %s105
    %p116 = scmp.eq.s32.totalorder %s14, 0
    %p117 = por %p115, %p116
    %p118 = scmp.ne.s32.totalorder %s104, %s105
    %p119 = scmp.eq.s32.totalorder %s15, 7
    %p120 = por %p118, %p119
    %p122 = scmp.ne.s32.totalorder %s105, %s121
    %p123 = scmp.eq.s32.totalorder %s15, 0
    %p124 = por %p122, %p123
    %p125 = scmp.le.s32.totalorder 1, %s9
    %p126 = scmp.lt.s32.totalorder %s9, 9
    %p127 = pnand %p125, %p126
    %p128 = pneg %p127
    // Predicated region
    $region9: #{tpu_custom_call.1} parent=5 // pred_check
      _
    $region10: #{tpu_custom_call.1} parent=5 // pred_check_branch
      %130 = sbr.rel (%p127) target = $region12
    $region11: #{tpu_custom_call.1} parent=5 // pred_region
      %s131 = ssub.s32 %s9, 1
      // Predicated region
      $region13: #{tpu_custom_call.1} parent=11 // pred_check
        %p132 = pneg %p68
      $region14: #{tpu_custom_call.1} parent=11 // pred_check_branch
        %134 = sbr.rel (%p132) target = $region16
      $region15: #{tpu_custom_call.1} parent=11 // pred_region
        _
      $region16: #{tpu_custom_call.1} parent=11 // pred_fallthru
        _
      // Predicated region
      $region17: #{tpu_custom_call.1} parent=11 // pred_check
        %p135 = pneg %p89
      $region18: #{tpu_custom_call.1} parent=11 // pred_check_branch
        %137 = sbr.rel (%p135) target = $region20
      $region19: #{tpu_custom_call.1} parent=11 // pred_region
        _
      $region20: #{tpu_custom_call.1} parent=11 // pred_fallthru
        _
    $region12: #{tpu_custom_call.1} parent=5 // pred_fallthru
      _
    %p138 = scmp.lt.s32.totalorder %s9, 8
    // Predicated region
    $region21: #{tpu_custom_call.1} parent=5 // pred_check
      %p139 = pneg %p138
    $region22: #{tpu_custom_call.1} parent=5 // pred_check_branch
      %141 = sbr.rel (%p139) target = $region24
    $region23: #{tpu_custom_call.1} parent=5 // pred_region
      // Predicated region
      $region25: #{tpu_custom_call.1} parent=23 // pred_check
        %p142 = pneg %p41
      $region26: #{tpu_custom_call.1} parent=23 // pred_check_branch
        %144 = sbr.rel (%p142) target = $region28
      $region27: #{tpu_custom_call.1} parent=23 // pred_region
        %p145 = scmp.lt.s32.totalorder %s16, 1
        %s146 = scalar_select %p145, %s16, 1
        %s147 = smul.addr %s146, 170
        %s148 = smul.addr %s147, 4
        %s149 = scalar_lea.vmem %s0, %s148
      $region28: #{tpu_custom_call.1} parent=23 // pred_fallthru
        _
    $region24: #{tpu_custom_call.1} parent=5 // pred_fallthru
      _
    %p150 = scmp.le.s32.totalorder 1, %s9
    %p151 = scmp.lt.s32.totalorder %s9, 9
    %p152 = pnand %p150, %p151
    %p153 = pneg %p152
    // Predicated region
    $region29: #{tpu_custom_call.1} parent=5 // pred_check
      _
    $region30: #{tpu_custom_call.1} parent=5 // pred_check_branch
      %155 = sbr.rel (%p152) target = $region32
    $region31: #{tpu_custom_call.1} parent=5 // pred_region
      %s156 = ssub.s32 %s9, 1
      %p157 = scmp.lt.s32.totalorder %s18, 1
      %s158 = scalar_select %p157, %s18, 1
      %s159 = smul.addr %s158, 170
      %s160 = smul.addr %s159, 4
      %s161 = scalar_lea.vmem %s0, %s160
      %p162 = pneg %p47
      %p163 = pneg %p44
      %p164 = pneg %p68
      %p165 = pneg %p65
      %p166 = pneg %p89
      %p167 = pneg %p86
      %p168 = pneg %p117
      %p169 = pneg %p114
      %s170 = smul.u32 32, %s19
      %p171 = scmp.lt.s32.totalorder %s18, 1
      %s172 = scalar_select %p171, %s18, 1
      %p173 = scmp.lt.s32.totalorder %s170, 127
      %s174 = scalar_select %p173, %s170, 127
      %s175 = smul.addr %s172, 128
      %s176 = sadd.s32 %s174, %s175
      %s177 = smul.addr %s176, 4
      %s178 = scalar_lea.vmem %s3, %s177
      %p179 = scmp.lt.s32.totalorder %s18, 1
      %s180 = scalar_select %p179, %s18, 1
      %s181 = smul.addr %s180, 170
      %s182 = smul.addr %s181, 4
      %s183 = scalar_lea.vmem %s0, %s182
      %s184 = smul.u32 32, %s19
      %p185 = scmp.lt.s32.totalorder %s18, 1
      %s186 = scalar_select %p185, %s18, 1
      %p187 = scmp.lt.s32.totalorder %s184, 127
      %s188 = scalar_select %p187, %s184, 127
      %s189 = smul.addr %s186, 128
      %s190 = sadd.s32 %s188, %s189
      %s191 = smul.addr %s190, 4
      %s192 = scalar_lea.vmem %s3, %s191
      %s193 = smul.u32 32, %s19
      %s195 = smul.u32 %s19, 8
      %s196 = smul.u32 %s195, 5
      %s197 = smul.addr %s196, 4
      %s198 = scalar_lea.vmem %s183, %s197
      %v199 = vld [vmem:[%s198] sm:$0xf]
      %v200 = vld [vmem:[%s198 + $0x4] sm:$0xf]
      %v201 = vld [vmem:[%s198 + $0x8] sm:$0xf]
      %v202 = vld [vmem:[%s198 + $0xc] sm:$0xf]
      %v203 = vld [vmem:[%s198 + $0x14] sm:$0xf]
      %v204 = vld [vmem:[%s198 + $0x18] sm:$0xf]
      %v205 = vld [vmem:[%s198 + $0x1c] sm:$0xf]
      %v206 = vld [vmem:[%s198 + $0x20] sm:$0xf]
      %v207 = vld [vmem:[%s198 + $0x28] sm:$0xf]
      %v208 = vld [vmem:[%s198 + $0x2c] sm:$0xf]
      %v209 = vld [vmem:[%s198 + $0x30] sm:$0xf]
      %v210 = vld [vmem:[%s198 + $0x34] sm:$0xf]
      %v211 = vld [vmem:[%s198 + $0x3c] sm:$0xf]
      %v212 = vld [vmem:[%s198 + $0x40] sm:$0xf]
      %v213 = vld [vmem:[%s198 + $0x44] sm:$0xf]
      %v214 = vld [vmem:[%s198 + $0x48] sm:$0xf]
      %v215 = vld [vmem:[%s198 + $0x50] sm:$0xf]
      %v216 = vld [vmem:[%s198 + $0x54] sm:$0xf]
      %v217 = vld [vmem:[%s198 + $0x58] sm:$0xf]
      %v218 = vld [vmem:[%s198 + $0x5c] sm:$0xf]
      %v219 = vld [vmem:[%s198 + $0x64] sm:$0xf]
      %v220 = vld [vmem:[%s198 + $0x68] sm:$0xf]
      %v221 = vld [vmem:[%s198 + $0x6c] sm:$0xf]
      %v222 = vld [vmem:[%s198 + $0x70] sm:$0xf]
      %v223 = vld [vmem:[%s198 + $0x78] sm:$0xf]
      %v224 = vld [vmem:[%s198 + $0x7c] sm:$0xf]
      %v225 = vld [vmem:[%s198 + $0x80] sm:$0xf]
      %v226 = vld [vmem:[%s198 + $0x84] sm:$0xf]
      %v227 = vld [vmem:[%s198 + $0x8c] sm:$0xf]
      %v228 = vld [vmem:[%s198 + $0x90] sm:$0xf]
      %v229 = vld [vmem:[%s198 + $0x94] sm:$0xf]
      %v230 = vld [vmem:[%s198 + $0x98] sm:$0xf]
      %v231 = vld [vmem:[%s198 + $0x10] sm:$0x1]
      %v232 = vld [vmem:[%s198 + $0x24] sm:$0x1]
      %v233 = vld [vmem:[%s198 + $0x38] sm:$0x1]
      %v234 = vld [vmem:[%s198 + $0x4c] sm:$0x1]
      %v235 = vld [vmem:[%s198 + $0x60] sm:$0x1]
      %v236 = vld [vmem:[%s198 + $0x74] sm:$0x1]
      %v237 = vld [vmem:[%s198 + $0x88] sm:$0x1]
      %v238 = vld [vmem:[%s198 + $0x9c] sm:$0x1]
      %v239 = vld [vmem:[%s198] sm:$0xe]
      %v240 = vld [vmem:[%s198 + $0x14] sm:$0xe]
      %v241 = vld [vmem:[%s198 + $0x28] sm:$0xe]
      %v242 = vld [vmem:[%s198 + $0x3c] sm:$0xe]
      %v243 = vld [vmem:[%s198 + $0x50] sm:$0xe]
      %v244 = vld [vmem:[%s198 + $0x64] sm:$0xe]
      %v245 = vld [vmem:[%s198 + $0x78] sm:$0xe]
      %v246 = vld [vmem:[%s198 + $0x8c] sm:$0xe]
      %s247 = sadd.s32 %s195, 1
      %s248 = smul.u32 %s247, 5
      %s249 = smul.addr %s248, 4
      %s250 = scalar_lea.vmem %s183, %s249
      %v251 = vld [vmem:[%s250] sm:$0xf]
      %v252 = vld [vmem:[%s250 + $0x4] sm:$0xf]
      %v253 = vld [vmem:[%s250 + $0x8] sm:$0xf]
      %v254 = vld [vmem:[%s250 + $0xc] sm:$0xf]
      %v255 = vld [vmem:[%s250 + $0x14] sm:$0xf]
      %v256 = vld [vmem:[%s250 + $0x18] sm:$0xf]
      %v257 = vld [vmem:[%s250 + $0x1c] sm:$0xf]
      %v258 = vld [vmem:[%s250 + $0x20] sm:$0xf]
      %v259 = vld [vmem:[%s250 + $0x28] sm:$0xf]
      %v260 = vld [vmem:[%s250 + $0x2c] sm:$0xf]
      %v261 = vld [vmem:[%s250 + $0x30] sm:$0xf]
      %v262 = vld [vmem:[%s250 + $0x34] sm:$0xf]
      %v263 = vld [vmem:[%s250 + $0x3c] sm:$0xf]
      %v264 = vld [vmem:[%s250 + $0x40] sm:$0xf]
      %v265 = vld [vmem:[%s250 + $0x44] sm:$0xf]
      %v266 = vld [vmem:[%s250 + $0x48] sm:$0xf]
      %v267 = vld [vmem:[%s250 + $0x50] sm:$0xf]
      %v268 = vld [vmem:[%s250 + $0x54] sm:$0xf]
      %v269 = vld [vmem:[%s250 + $0x58] sm:$0xf]
      %v270 = vld [vmem:[%s250 + $0x5c] sm:$0xf]
      %v271 = vld [vmem:[%s250 + $0x64] sm:$0xf]
      %v272 = vld [vmem:[%s250 + $0x68] sm:$0xf]
      %v273 = vld [vmem:[%s250 + $0x6c] sm:$0xf]
      %v274 = vld [vmem:[%s250 + $0x70] sm:$0xf]
      %v275 = vld [vmem:[%s250 + $0x78] sm:$0xf]
      %v276 = vld [vmem:[%s250 + $0x7c] sm:$0xf]
      %v277 = vld [vmem:[%s250 + $0x80] sm:$0xf]
      %v278 = vld [vmem:[%s250 + $0x84] sm:$0xf]
      %v279 = vld [vmem:[%s250 + $0x8c] sm:$0xf]
      %v280 = vld [vmem:[%s250 + $0x90] sm:$0xf]
      %v281 = vld [vmem:[%s250 + $0x94] sm:$0xf]
      %v282 = vld [vmem:[%s250 + $0x98] sm:$0xf]
      %v283 = vld [vmem:[%s250 + $0x10] sm:$0x1]
      %v284 = vld [vmem:[%s250 + $0x24] sm:$0x1]
      %v285 = vld [vmem:[%s250 + $0x38] sm:$0x1]
      %v286 = vld [vmem:[%s250 + $0x4c] sm:$0x1]
      %v287 = vld [vmem:[%s250 + $0x60] sm:$0x1]
      %v288 = vld [vmem:[%s250 + $0x74] sm:$0x1]
      %v289 = vld [vmem:[%s250 + $0x88] sm:$0x1]
      %v290 = vld [vmem:[%s250 + $0x9c] sm:$0x1]
      %v291 = vld [vmem:[%s250] sm:$0xe]
      %v292 = vld [vmem:[%s250 + $0x14] sm:$0xe]
      %v293 = vld [vmem:[%s250 + $0x28] sm:$0xe]
      %v294 = vld [vmem:[%s250 + $0x3c] sm:$0xe]
      %v295 = vld [vmem:[%s250 + $0x50] sm:$0xe]
      %v296 = vld [vmem:[%s250 + $0x64] sm:$0xe]
      %v297 = vld [vmem:[%s250 + $0x78] sm:$0xe]
      %v298 = vld [vmem:[%s250 + $0x8c] sm:$0xe]
      %s299 = sadd.s32 %s195, 2
      %s300 = smul.u32 %s299, 5
      %s301 = smul.addr %s300, 4
      %s302 = scalar_lea.vmem %s183, %s301
      %v303 = vld [vmem:[%s302] sm:$0xf]
      %v304 = vld [vmem:[%s302 + $0x4] sm:$0xf]
      %v305 = vld [vmem:[%s302 + $0x8] sm:$0xf]
      %v306 = vld [vmem:[%s302 + $0xc] sm:$0xf]
      %v307 = vld [vmem:[%s302 + $0x14] sm:$0xf]
      %v308 = vld [vmem:[%s302 + $0x18] sm:$0xf]
      %v309 = vld [vmem:[%s302 + $0x1c] sm:$0xf]
      %v310 = vld [vmem:[%s302 + $0x20] sm:$0xf]
      %v311 = vld [vmem:[%s302 + $0x28] sm:$0xf]
      %v312 = vld [vmem:[%s302 + $0x2c] sm:$0xf]
      %v313 = vld [vmem:[%s302 + $0x30] sm:$0xf]
      %v314 = vld [vmem:[%s302 + $0x34] sm:$0xf]
      %v315 = vld [vmem:[%s302 + $0x3c] sm:$0xf]
      %v316 = vld [vmem:[%s302 + $0x40] sm:$0xf]
      %v317 = vld [vmem:[%s302 + $0x44] sm:$0xf]
      %v318 = vld [vmem:[%s302 + $0x48] sm:$0xf]
      %v319 = vld [vmem:[%s302 + $0x50] sm:$0xf]
      %v320 = vld [vmem:[%s302 + $0x54] sm:$0xf]
      %v321 = vld [vmem:[%s302 + $0x58] sm:$0xf]
      %v322 = vld [vmem:[%s302 + $0x5c] sm:$0xf]
      %v323 = vld [vmem:[%s302 + $0x64] sm:$0xf]
      %v324 = vld [vmem:[%s302 + $0x68] sm:$0xf]
      %v325 = vld [vmem:[%s302 + $0x6c] sm:$0xf]
      %v326 = vld [vmem:[%s302 + $0x70] sm:$0xf]
      %v327 = vld [vmem:[%s302 + $0x78] sm:$0xf]
      %v328 = vld [vmem:[%s302 + $0x7c] sm:$0xf]
      %v329 = vld [vmem:[%s302 + $0x80] sm:$0xf]
      %v330 = vld [vmem:[%s302 + $0x84] sm:$0xf]
      %v331 = vld [vmem:[%s302 + $0x8c] sm:$0xf]
      %v332 = vld [vmem:[%s302 + $0x90] sm:$0xf]
      %v333 = vld [vmem:[%s302 + $0x94] sm:$0xf]
      %v334 = vld [vmem:[%s302 + $0x98] sm:$0xf]
      %v335 = vld [vmem:[%s302 + $0x10] sm:$0x1]
      %v336 = vld [vmem:[%s302 + $0x24] sm:$0x1]
      %v337 = vld [vmem:[%s302 + $0x38] sm:$0x1]
      %v338 = vld [vmem:[%s302 + $0x4c] sm:$0x1]
      %v339 = vld [vmem:[%s302 + $0x60] sm:$0x1]
      %v340 = vld [vmem:[%s302 + $0x74] sm:$0x1]
      %v341 = vld [vmem:[%s302 + $0x88] sm:$0x1]
      %v342 = vld [vmem:[%s302 + $0x9c] sm:$0x1]
      %v343 = vld [vmem:[%s302] sm:$0xe]
      %v344 = vld [vmem:[%s302 + $0x14] sm:$0xe]
      %v345 = vld [vmem:[%s302 + $0x28] sm:$0xe]
      %v346 = vld [vmem:[%s302 + $0x3c] sm:$0xe]
      %v347 = vld [vmem:[%s302 + $0x50] sm:$0xe]
      %v348 = vld [vmem:[%s302 + $0x64] sm:$0xe]
      %v349 = vld [vmem:[%s302 + $0x78] sm:$0xe]
      %v350 = vld [vmem:[%s302 + $0x8c] sm:$0xe]
      %v383 = vunpack.c.l.b16 %v199
      %v384 = vunpack.c.l.b16 %v200
      %v385 = vunpack.c.l.b16 %v201
      %v386 = vunpack.c.l.b16 %v202
      %v387 = vunpack.c.l.b16 %v203
      %v388 = vunpack.c.l.b16 %v204
      %v389 = vunpack.c.l.b16 %v205
      %v390 = vunpack.c.l.b16 %v206
      %v391 = vunpack.c.l.b16 %v207
      %v392 = vunpack.c.l.b16 %v208
      %v393 = vunpack.c.l.b16 %v209
      %v394 = vunpack.c.l.b16 %v210
      %v395 = vunpack.c.l.b16 %v211
      %v396 = vunpack.c.l.b16 %v212
      %v397 = vunpack.c.l.b16 %v213
      %v398 = vunpack.c.l.b16 %v214
      %v399 = vunpack.c.l.b16 %v215
      %v400 = vunpack.c.l.b16 %v216
      %v401 = vunpack.c.l.b16 %v217
      %v402 = vunpack.c.l.b16 %v218
      %v403 = vunpack.c.l.b16 %v219
      %v404 = vunpack.c.l.b16 %v220
      %v405 = vunpack.c.l.b16 %v221
      %v406 = vunpack.c.l.b16 %v222
      %v407 = vunpack.c.l.b16 %v223
      %v408 = vunpack.c.l.b16 %v224
      %v409 = vunpack.c.l.b16 %v225
      %v410 = vunpack.c.l.b16 %v226
      %v411 = vunpack.c.l.b16 %v227
      %v412 = vunpack.c.l.b16 %v228
      %v413 = vunpack.c.l.b16 %v229
      %v414 = vunpack.c.l.b16 %v230
      %v415 = vpack.c.b16 %v384, %v383
      %v416 = vpack.c.b16 %v386, %v385
      %v417 = vpack.c.b16 %v388, %v387
      %v418 = vpack.c.b16 %v390, %v389
      %v419 = vpack.c.b16 %v392, %v391
      %v420 = vpack.c.b16 %v394, %v393
      %v421 = vpack.c.b16 %v396, %v395
      %v422 = vpack.c.b16 %v398, %v397
      %v423 = vpack.c.b16 %v400, %v399
      %v424 = vpack.c.b16 %v402, %v401
      %v425 = vpack.c.b16 %v404, %v403
      %v426 = vpack.c.b16 %v406, %v405
      %v427 = vpack.c.b16 %v408, %v407
      %v428 = vpack.c.b16 %v410, %v409
      %v429 = vpack.c.b16 %v412, %v411
      %v430 = vpack.c.b16 %v414, %v413
      %v439 = vunpack.c.l.b16 %v231
      %v440 = vunpack.c.l.b16 %v232
      %v441 = vunpack.c.l.b16 %v233
      %v442 = vunpack.c.l.b16 %v234
      %v443 = vunpack.c.l.b16 %v235
      %v444 = vunpack.c.l.b16 %v236
      %v445 = vunpack.c.l.b16 %v237
      %v446 = vunpack.c.l.b16 %v238
      %v447 = vpack.c.b16 %v439, %v439
      %v448 = vpack.c.b16 %v440, %v440
      %v449 = vpack.c.b16 %v441, %v441
      %v450 = vpack.c.b16 %v442, %v442
      %v451 = vpack.c.b16 %v443, %v443
      %v452 = vpack.c.b16 %v444, %v444
      %v453 = vpack.c.b16 %v445, %v445
      %v454 = vpack.c.b16 %v446, %v446
      %vm455 = vsmask.f32 7424
      %v457 = vshrl.u32 %v415, 16
      %v459 = vshll.u32 %v415, 16
      %v461 = vrot.slane %v459, 1
      %v462 = vor.u32 %v457, %v461
      %v464 = vshll.u32 %v416, 16
      %v466 = vrot.slane %v464, 1
      %v467 = vsel %vm455, %v462, %v466
      %v468 = vshrl.u32 %v416, 16
      %v470 = vor.u32 %v468, %v466
      %v472 = vshll.u32 %v447, 16
      %v474 = vrot.slane %v472, 1
      %v475 = vsel %vm455, %v470, %v474
      %v477 = vshrl.u32 %v417, 16
      %v479 = vshll.u32 %v417, 16
      %v481 = vrot.slane %v479, 1
      %v482 = vor.u32 %v477, %v481
      %v484 = vshll.u32 %v418, 16
      %v486 = vrot.slane %v484, 1
      %v487 = vsel %vm455, %v482, %v486
      %v488 = vshrl.u32 %v418, 16
      %v490 = vor.u32 %v488, %v486
      %v492 = vshll.u32 %v448, 16
      %v494 = vrot.slane %v492, 1
      %v495 = vsel %vm455, %v490, %v494
      %v497 = vshrl.u32 %v419, 16
      %v499 = vshll.u32 %v419, 16
      %v501 = vrot.slane %v499, 1
      %v502 = vor.u32 %v497, %v501
      %v504 = vshll.u32 %v420, 16
      %v506 = vrot.slane %v504, 1
      %v507 = vsel %vm455, %v502, %v506
      %v508 = vshrl.u32 %v420, 16
      %v510 = vor.u32 %v508, %v506
      %v512 = vshll.u32 %v449, 16
      %v514 = vrot.slane %v512, 1
      %v515 = vsel %vm455, %v510, %v514
      %v517 = vshrl.u32 %v421, 16
      %v519 = vshll.u32 %v421, 16
      %v521 = vrot.slane %v519, 1
      %v522 = vor.u32 %v517, %v521
      %v524 = vshll.u32 %v422, 16
      %v526 = vrot.slane %v524, 1
      %v527 = vsel %vm455, %v522, %v526
      %v528 = vshrl.u32 %v422, 16
      %v530 = vor.u32 %v528, %v526
      %v532 = vshll.u32 %v450, 16
      %v534 = vrot.slane %v532, 1
      %v535 = vsel %vm455, %v530, %v534
      %v537 = vshrl.u32 %v423, 16
      %v539 = vshll.u32 %v423, 16
      %v541 = vrot.slane %v539, 1
      %v542 = vor.u32 %v537, %v541
      %v544 = vshll.u32 %v424, 16
      %v546 = vrot.slane %v544, 1
      %v547 = vsel %vm455, %v542, %v546
      %v548 = vshrl.u32 %v424, 16
      %v550 = vor.u32 %v548, %v546
      %v552 = vshll.u32 %v451, 16
      %v554 = vrot.slane %v552, 1
      %v555 = vsel %vm455, %v550, %v554
      %v557 = vshrl.u32 %v425, 16
      %v559 = vshll.u32 %v425, 16
      %v561 = vrot.slane %v559, 1
      %v562 = vor.u32 %v557, %v561
      %v564 = vshll.u32 %v426, 16
      %v566 = vrot.slane %v564, 1
      %v567 = vsel %vm455, %v562, %v566
      %v568 = vshrl.u32 %v426, 16
      %v570 = vor.u32 %v568, %v566
      %v572 = vshll.u32 %v452, 16
      %v574 = vrot.slane %v572, 1
      %v575 = vsel %vm455, %v570, %v574
      %v577 = vshrl.u32 %v427, 16
      %v579 = vshll.u32 %v427, 16
      %v581 = vrot.slane %v579, 1
      %v582 = vor.u32 %v577, %v581
      %v584 = vshll.u32 %v428, 16
      %v586 = vrot.slane %v584, 1
      %v587 = vsel %vm455, %v582, %v586
      %v588 = vshrl.u32 %v428, 16
      %v590 = vor.u32 %v588, %v586
      %v592 = vshll.u32 %v453, 16
      %v594 = vrot.slane %v592, 1
      %v595 = vsel %vm455, %v590, %v594
      %v597 = vshrl.u32 %v429, 16
      %v599 = vshll.u32 %v429, 16
      %v601 = vrot.slane %v599, 1
      %v602 = vor.u32 %v597, %v601
      %v604 = vshll.u32 %v430, 16
      %v606 = vrot.slane %v604, 1
      %v607 = vsel %vm455, %v602, %v606
      %v608 = vshrl.u32 %v430, 16
      %v610 = vor.u32 %v608, %v606
      %v612 = vshll.u32 %v454, 16
      %v614 = vrot.slane %v612, 1
      %v615 = vsel %vm455, %v610, %v614
      %616 = vrot.lane.b32.xlu0 %v467, 3
      %v617 = vpop.permute.xlu0 %616
      %618 = vrot.lane.b32.xlu0 %v475, 3
      %v619 = vpop.permute.xlu0 %618
      %620 = vrot.lane.b32.xlu0 %v487, 3
      %v621 = vpop.permute.xlu0 %620
      %622 = vrot.lane.b32.xlu0 %v495, 3
      %v623 = vpop.permute.xlu0 %622
      %624 = vrot.lane.b32.xlu0 %v507, 3
      %v625 = vpop.permute.xlu0 %624
      %626 = vrot.lane.b32.xlu0 %v515, 3
      %v627 = vpop.permute.xlu0 %626
      %628 = vrot.lane.b32.xlu0 %v527, 3
      %v629 = vpop.permute.xlu0 %628
      %630 = vrot.lane.b32.xlu0 %v535, 3
      %v631 = vpop.permute.xlu0 %630
      %632 = vrot.lane.b32.xlu0 %v547, 3
      %v633 = vpop.permute.xlu0 %632
      %634 = vrot.lane.b32.xlu0 %v555, 3
      %v635 = vpop.permute.xlu0 %634
      %636 = vrot.lane.b32.xlu0 %v567, 3
      %v637 = vpop.permute.xlu0 %636
      %638 = vrot.lane.b32.xlu0 %v575, 3
      %v639 = vpop.permute.xlu0 %638
      %640 = vrot.lane.b32.xlu0 %v587, 3
      %v641 = vpop.permute.xlu0 %640
      %642 = vrot.lane.b32.xlu0 %v595, 3
      %v643 = vpop.permute.xlu0 %642
      %644 = vrot.lane.b32.xlu0 %v607, 3
      %v645 = vpop.permute.xlu0 %644
      %646 = vrot.lane.b32.xlu0 %v615, 3
      %v647 = vpop.permute.xlu0 %646
      %v656 = vunpack.c.l.b16 %v239
      %v657 = vunpack.c.l.b16 %v240
      %v658 = vunpack.c.l.b16 %v241
      %v659 = vunpack.c.l.b16 %v242
      %v660 = vunpack.c.l.b16 %v243
      %v661 = vunpack.c.l.b16 %v244
      %v662 = vunpack.c.l.b16 %v245
      %v663 = vunpack.c.l.b16 %v246
      %v664 = vpack.c.b16 %v384, %v656
      %v665 = vpack.c.b16 %v388, %v657
      %v666 = vpack.c.b16 %v392, %v658
      %v667 = vpack.c.b16 %v396, %v659
      %v668 = vpack.c.b16 %v400, %v660
      %v669 = vpack.c.b16 %v404, %v661
      %v670 = vpack.c.b16 %v408, %v662
      %v671 = vpack.c.b16 %v412, %v663
      %vm672 = vcmask 1046528
      %v673 = vrot.slane %v664, 1
      %v674 = vrot.slane %v416, 1
      %v675 = vsel %vm672, %v673, %v674
      %v676 = vrot.slane %v447, 1
      %v677 = vsel %vm672, %v674, %v676
      %v678 = vrot.slane %v665, 1
      %v679 = vrot.slane %v418, 1
      %v680 = vsel %vm672, %v678, %v679
      %v681 = vrot.slane %v448, 1
      %v682 = vsel %vm672, %v679, %v681
      %v683 = vrot.slane %v666, 1
      %v684 = vrot.slane %v420, 1
      %v685 = vsel %vm672, %v683, %v684
      %v686 = vrot.slane %v449, 1
      %v687 = vsel %vm672, %v684, %v686
      %v688 = vrot.slane %v667, 1
      %v689 = vrot.slane %v422, 1
      %v690 = vsel %vm672, %v688, %v689
      %v691 = vrot.slane %v450, 1
      %v692 = vsel %vm672, %v689, %v691
      %v693 = vrot.slane %v668, 1
      %v694 = vrot.slane %v424, 1
      %v695 = vsel %vm672, %v693, %v694
      %v696 = vrot.slane %v451, 1
      %v697 = vsel %vm672, %v694, %v696
      %v698 = vrot.slane %v669, 1
      %v699 = vrot.slane %v426, 1
      %v700 = vsel %vm672, %v698, %v699
      %v701 = vrot.slane %v452, 1
      %v702 = vsel %vm672, %v699, %v701
      %v703 = vrot.slane %v670, 1
      %v704 = vrot.slane %v428, 1
      %v705 = vsel %vm672, %v703, %v704
      %v706 = vrot.slane %v453, 1
      %v707 = vsel %vm672, %v704, %v706
      %v708 = vrot.slane %v671, 1
      %v709 = vrot.slane %v430, 1
      %v710 = vsel %vm672, %v708, %v709
      %v711 = vrot.slane %v454, 1
      %v712 = vsel %vm672, %v709, %v711
      %713 = vrot.lane.b32.xlu0 %v675, 6
      %v714 = vpop.permute.xlu0 %713
      %715 = vrot.lane.b32.xlu0 %v677, 6
      %v716 = vpop.permute.xlu0 %715
      %717 = vrot.lane.b32.xlu0 %v680, 6
      %v718 = vpop.permute.xlu0 %717
      %719 = vrot.lane.b32.xlu0 %v682, 6
      %v720 = vpop.permute.xlu0 %719
      %721 = vrot.lane.b32.xlu0 %v685, 6
      %v722 = vpop.permute.xlu0 %721
      %723 = vrot.lane.b32.xlu0 %v687, 6
      %v724 = vpop.permute.xlu0 %723
      %725 = vrot.lane.b32.xlu0 %v690, 6
      %v726 = vpop.permute.xlu0 %725
      %727 = vrot.lane.b32.xlu0 %v692, 6
      %v728 = vpop.permute.xlu0 %727
      %729 = vrot.lane.b32.xlu0 %v695, 6
      %v730 = vpop.permute.xlu0 %729
      %731 = vrot.lane.b32.xlu0 %v697, 6
      %v732 = vpop.permute.xlu0 %731
      %733 = vrot.lane.b32.xlu0 %v700, 6
      %v734 = vpop.permute.xlu0 %733
      %735 = vrot.lane.b32.xlu0 %v702, 6
      %v736 = vpop.permute.xlu0 %735
      %737 = vrot.lane.b32.xlu0 %v705, 6
      %v738 = vpop.permute.xlu0 %737
      %739 = vrot.lane.b32.xlu0 %v707, 6
      %v740 = vpop.permute.xlu0 %739
      %741 = vrot.lane.b32.xlu0 %v710, 6
      %v742 = vpop.permute.xlu0 %741
      %743 = vrot.lane.b32.xlu0 %v712, 6
      %v744 = vpop.permute.xlu0 %743
      %v777 = vunpack.c.l.b16 %v251
      %v778 = vunpack.c.l.b16 %v252
      %v779 = vunpack.c.l.b16 %v253
      %v780 = vunpack.c.l.b16 %v254
      %v781 = vunpack.c.l.b16 %v255
      %v782 = vunpack.c.l.b16 %v256
      %v783 = vunpack.c.l.b16 %v257
      %v784 = vunpack.c.l.b16 %v258
      %v785 = vunpack.c.l.b16 %v259
      %v786 = vunpack.c.l.b16 %v260
      %v787 = vunpack.c.l.b16 %v261
      %v788 = vunpack.c.l.b16 %v262
      %v789 = vunpack.c.l.b16 %v263
      %v790 = vunpack.c.l.b16 %v264
      %v791 = vunpack.c.l.b16 %v265
      %v792 = vunpack.c.l.b16 %v266
      %v793 = vunpack.c.l.b16 %v267
      %v794 = vunpack.c.l.b16 %v268
      %v795 = vunpack.c.l.b16 %v269
      %v796 = vunpack.c.l.b16 %v270
      %v797 = vunpack.c.l.b16 %v271
      %v798 = vunpack.c.l.b16 %v272
      %v799 = vunpack.c.l.b16 %v273
      %v800 = vunpack.c.l.b16 %v274
      %v801 = vunpack.c.l.b16 %v275
      %v802 = vunpack.c.l.b16 %v276
      %v803 = vunpack.c.l.b16 %v277
      %v804 = vunpack.c.l.b16 %v278
      %v805 = vunpack.c.l.b16 %v279
      %v806 = vunpack.c.l.b16 %v280
      %v807 = vunpack.c.l.b16 %v281
      %v808 = vunpack.c.l.b16 %v282
      %v809 = vpack.c.b16 %v778, %v777
      %v810 = vpack.c.b16 %v780, %v779
      %v811 = vpack.c.b16 %v782, %v781
      %v812 = vpack.c.b16 %v784, %v783
      %v813 = vpack.c.b16 %v786, %v785
      %v814 = vpack.c.b16 %v788, %v787
      %v815 = vpack.c.b16 %v790, %v789
      %v816 = vpack.c.b16 %v792, %v791
      %v817 = vpack.c.b16 %v794, %v793
      %v818 = vpack.c.b16 %v796, %v795
      %v819 = vpack.c.b16 %v798, %v797
      %v820 = vpack.c.b16 %v800, %v799
      %v821 = vpack.c.b16 %v802, %v801
      %v822 = vpack.c.b16 %v804, %v803
      %v823 = vpack.c.b16 %v806, %v805
      %v824 = vpack.c.b16 %v808, %v807
      %825 = vrot.lane.b32.xlu0 %v809, 9
      %v826 = vpop.permute.xlu0 %825
      %827 = vrot.lane.b32.xlu0 %v810, 9
      %v828 = vpop.permute.xlu0 %827
      %829 = vrot.lane.b32.xlu0 %v811, 9
      %v830 = vpop.permute.xlu0 %829
      %831 = vrot.lane.b32.xlu0 %v812, 9
      %v832 = vpop.permute.xlu0 %831
      %833 = vrot.lane.b32.xlu0 %v813, 9
      %v834 = vpop.permute.xlu0 %833
      %835 = vrot.lane.b32.xlu0 %v814, 9
      %v836 = vpop.permute.xlu0 %835
      %837 = vrot.lane.b32.xlu0 %v815, 9
      %v838 = vpop.permute.xlu0 %837
      %839 = vrot.lane.b32.xlu0 %v816, 9
      %v840 = vpop.permute.xlu0 %839
      %841 = vrot.lane.b32.xlu0 %v817, 9
      %v842 = vpop.permute.xlu0 %841
      %843 = vrot.lane.b32.xlu0 %v818, 9
      %v844 = vpop.permute.xlu0 %843
      %845 = vrot.lane.b32.xlu0 %v819, 9
      %v846 = vpop.permute.xlu0 %845
      %847 = vrot.lane.b32.xlu0 %v820, 9
      %v848 = vpop.permute.xlu0 %847
      %849 = vrot.lane.b32.xlu0 %v821, 9
      %v850 = vpop.permute.xlu0 %849
      %851 = vrot.lane.b32.xlu0 %v822, 9
      %v852 = vpop.permute.xlu0 %851
      %853 = vrot.lane.b32.xlu0 %v823, 9
      %v854 = vpop.permute.xlu0 %853
      %855 = vrot.lane.b32.xlu0 %v824, 9
      %v856 = vpop.permute.xlu0 %855
      %v865 = vunpack.c.l.b16 %v283
      %v866 = vunpack.c.l.b16 %v284
      %v867 = vunpack.c.l.b16 %v285
      %v868 = vunpack.c.l.b16 %v286
      %v869 = vunpack.c.l.b16 %v287
      %v870 = vunpack.c.l.b16 %v288
      %v871 = vunpack.c.l.b16 %v289
      %v872 = vunpack.c.l.b16 %v290
      %v873 = vpack.c.b16 %v865, %v865
      %v874 = vpack.c.b16 %v866, %v866
      %v875 = vpack.c.b16 %v867, %v867
      %v876 = vpack.c.b16 %v868, %v868
      %v877 = vpack.c.b16 %v869, %v869
      %v878 = vpack.c.b16 %v870, %v870
      %v879 = vpack.c.b16 %v871, %v871
      %v880 = vpack.c.b16 %v872, %v872
      %v882 = vshrl.u32 %v809, 16
      %v884 = vshll.u32 %v809, 16
      %v886 = vrot.slane %v884, 1
      %v887 = vor.u32 %v882, %v886
      %v889 = vshll.u32 %v810, 16
      %v891 = vrot.slane %v889, 1
      %v892 = vsel %vm455, %v887, %v891
      %v893 = vshrl.u32 %v810, 16
      %v895 = vor.u32 %v893, %v891
      %v897 = vshll.u32 %v873, 16
      %v899 = vrot.slane %v897, 1
      %v900 = vsel %vm455, %v895, %v899
      %v902 = vshrl.u32 %v811, 16
      %v904 = vshll.u32 %v811, 16
      %v906 = vrot.slane %v904, 1
      %v907 = vor.u32 %v902, %v906
      %v909 = vshll.u32 %v812, 16
      %v911 = vrot.slane %v909, 1
      %v912 = vsel %vm455, %v907, %v911
      %v913 = vshrl.u32 %v812, 16
      %v915 = vor.u32 %v913, %v911
      %v917 = vshll.u32 %v874, 16
      %v919 = vrot.slane %v917, 1
      %v920 = vsel %vm455, %v915, %v919
      %v922 = vshrl.u32 %v813, 16
      %v924 = vshll.u32 %v813, 16
      %v926 = vrot.slane %v924, 1
      %v927 = vor.u32 %v922, %v926
      %v929 = vshll.u32 %v814, 16
      %v931 = vrot.slane %v929, 1
      %v932 = vsel %vm455, %v927, %v931
      %v933 = vshrl.u32 %v814, 16
      %v935 = vor.u32 %v933, %v931
      %v937 = vshll.u32 %v875, 16
      %v939 = vrot.slane %v937, 1
      %v940 = vsel %vm455, %v935, %v939
      %v942 = vshrl.u32 %v815, 16
      %v944 = vshll.u32 %v815, 16
      %v946 = vrot.slane %v944, 1
      %v947 = vor.u32 %v942, %v946
      %v949 = vshll.u32 %v816, 16
      %v951 = vrot.slane %v949, 1
      %v952 = vsel %vm455, %v947, %v951
      %v953 = vshrl.u32 %v816, 16
      %v955 = vor.u32 %v953, %v951
      %v957 = vshll.u32 %v876, 16
      %v959 = vrot.slane %v957, 1
      %v960 = vsel %vm455, %v955, %v959
      %v962 = vshrl.u32 %v817, 16
      %v964 = vshll.u32 %v817, 16
      %v966 = vrot.slane %v964, 1
      %v967 = vor.u32 %v962, %v966
      %v969 = vshll.u32 %v818, 16
      %v971 = vrot.slane %v969, 1
      %v972 = vsel %vm455, %v967, %v971
      %v973 = vshrl.u32 %v818, 16
      %v975 = vor.u32 %v973, %v971
      %v977 = vshll.u32 %v877, 16
      %v979 = vrot.slane %v977, 1
      %v980 = vsel %vm455, %v975, %v979
      %v982 = vshrl.u32 %v819, 16
      %v984 = vshll.u32 %v819, 16
      %v986 = vrot.slane %v984, 1
      %v987 = vor.u32 %v982, %v986
      %v989 = vshll.u32 %v820, 16
      %v991 = vrot.slane %v989, 1
      %v992 = vsel %vm455, %v987, %v991
      %v993 = vshrl.u32 %v820, 16
      %v995 = vor.u32 %v993, %v991
      %v997 = vshll.u32 %v878, 16
      %v999 = vrot.slane %v997, 1
      %v1000 = vsel %vm455, %v995, %v999
      %v1002 = vshrl.u32 %v821, 16
      %v1004 = vshll.u32 %v821, 16
      %v1006 = vrot.slane %v1004, 1
      %v1007 = vor.u32 %v1002, %v1006
      %v1009 = vshll.u32 %v822, 16
      %v1011 = vrot.slane %v1009, 1
      %v1012 = vsel %vm455, %v1007, %v1011
      %v1013 = vshrl.u32 %v822, 16
      %v1015 = vor.u32 %v1013, %v1011
      %v1017 = vshll.u32 %v879, 16
      %v1019 = vrot.slane %v1017, 1
      %v1020 = vsel %vm455, %v1015, %v1019
      %v1022 = vshrl.u32 %v823, 16
      %v1024 = vshll.u32 %v823, 16
      %v1026 = vrot.slane %v1024, 1
      %v1027 = vor.u32 %v1022, %v1026
      %v1029 = vshll.u32 %v824, 16
      %v1031 = vrot.slane %v1029, 1
      %v1032 = vsel %vm455, %v1027, %v1031
      %v1033 = vshrl.u32 %v824, 16
      %v1035 = vor.u32 %v1033, %v1031
      %v1037 = vshll.u32 %v880, 16
      %v1039 = vrot.slane %v1037, 1
      %v1040 = vsel %vm455, %v1035, %v1039
      %1041 = vrot.lane.b32.xlu0 %v892, 12
      %v1042 = vpop.permute.xlu0 %1041
      %1043 = vrot.lane.b32.xlu0 %v900, 12
      %v1044 = vpop.permute.xlu0 %1043
      %1045 = vrot.lane.b32.xlu0 %v912, 12
      %v1046 = vpop.permute.xlu0 %1045
      %1047 = vrot.lane.b32.xlu0 %v920, 12
      %v1048 = vpop.permute.xlu0 %1047
      %1049 = vrot.lane.b32.xlu0 %v932, 12
      %v1050 = vpop.permute.xlu0 %1049
      %1051 = vrot.lane.b32.xlu0 %v940, 12
      %v1052 = vpop.permute.xlu0 %1051
      %1053 = vrot.lane.b32.xlu0 %v952, 12
      %v1054 = vpop.permute.xlu0 %1053
      %1055 = vrot.lane.b32.xlu0 %v960, 12
      %v1056 = vpop.permute.xlu0 %1055
      %1057 = vrot.lane.b32.xlu0 %v972, 12
      %v1058 = vpop.permute.xlu0 %1057
      %1059 = vrot.lane.b32.xlu0 %v980, 12
      %v1060 = vpop.permute.xlu0 %1059
      %1061 = vrot.lane.b32.xlu0 %v992, 12
      %v1062 = vpop.permute.xlu0 %1061
      %1063 = vrot.lane.b32.xlu0 %v1000, 12
      %v1064 = vpop.permute.xlu0 %1063
      %1065 = vrot.lane.b32.xlu0 %v1012, 12
      %v1066 = vpop.permute.xlu0 %1065
      %1067 = vrot.lane.b32.xlu0 %v1020, 12
      %v1068 = vpop.permute.xlu0 %1067
      %1069 = vrot.lane.b32.xlu0 %v1032, 12
      %v1070 = vpop.permute.xlu0 %1069
      %1071 = vrot.lane.b32.xlu0 %v1040, 12
      %v1072 = vpop.permute.xlu0 %1071
      %v1081 = vunpack.c.l.b16 %v291
      %v1082 = vunpack.c.l.b16 %v292
      %v1083 = vunpack.c.l.b16 %v293
      %v1084 = vunpack.c.l.b16 %v294
      %v1085 = vunpack.c.l.b16 %v295
      %v1086 = vunpack.c.l.b16 %v296
      %v1087 = vunpack.c.l.b16 %v297
      %v1088 = vunpack.c.l.b16 %v298
      %v1089 = vpack.c.b16 %v778, %v1081
      %v1090 = vpack.c.b16 %v782, %v1082
      %v1091 = vpack.c.b16 %v786, %v1083
      %v1092 = vpack.c.b16 %v790, %v1084
      %v1093 = vpack.c.b16 %v794, %v1085
      %v1094 = vpack.c.b16 %v798, %v1086
      %v1095 = vpack.c.b16 %v802, %v1087
      %v1096 = vpack.c.b16 %v806, %v1088
      %v1097 = vrot.slane %v1089, 1
      %v1098 = vrot.slane %v810, 1
      %v1099 = vsel %vm672, %v1097, %v1098
      %v1100 = vrot.slane %v873, 1
      %v1101 = vsel %vm672, %v1098, %v1100
      %v1102 = vrot.slane %v1090, 1
      %v1103 = vrot.slane %v812, 1
      %v1104 = vsel %vm672, %v1102, %v1103
      %v1105 = vrot.slane %v874, 1
      %v1106 = vsel %vm672, %v1103, %v1105
      %v1107 = vrot.slane %v1091, 1
      %v1108 = vrot.slane %v814, 1
      %v1109 = vsel %vm672, %v1107, %v1108
      %v1110 = vrot.slane %v875, 1
      %v1111 = vsel %vm672, %v1108, %v1110
      %v1112 = vrot.slane %v1092, 1
      %v1113 = vrot.slane %v816, 1
      %v1114 = vsel %vm672, %v1112, %v1113
      %v1115 = vrot.slane %v876, 1
      %v1116 = vsel %vm672, %v1113, %v1115
      %v1117 = vrot.slane %v1093, 1
      %v1118 = vrot.slane %v818, 1
      %v1119 = vsel %vm672, %v1117, %v1118
      %v1120 = vrot.slane %v877, 1
      %v1121 = vsel %vm672, %v1118, %v1120
      %v1122 = vrot.slane %v1094, 1
      %v1123 = vrot.slane %v820, 1
      %v1124 = vsel %vm672, %v1122, %v1123
      %v1125 = vrot.slane %v878, 1
      %v1126 = vsel %vm672, %v1123, %v1125
      %v1127 = vrot.slane %v1095, 1
      %v1128 = vrot.slane %v822, 1
      %v1129 = vsel %vm672, %v1127, %v1128
      %v1130 = vrot.slane %v879, 1
      %v1131 = vsel %vm672, %v1128, %v1130
      %v1132 = vrot.slane %v1096, 1
      %v1133 = vrot.slane %v824, 1
      %v1134 = vsel %vm672, %v1132, %v1133
      %v1135 = vrot.slane %v880, 1
      %v1136 = vsel %vm672, %v1133, %v1135
      %1137 = vrot.lane.b32.xlu0 %v1099, 15
      %v1138 = vpop.permute.xlu0 %1137
      %1139 = vrot.lane.b32.xlu0 %v1101, 15
      %v1140 = vpop.permute.xlu0 %1139
      %1141 = vrot.lane.b32.xlu0 %v1104, 15
      %v1142 = vpop.permute.xlu0 %1141
      %1143 = vrot.lane.b32.xlu0 %v1106, 15
      %v1144 = vpop.permute.xlu0 %1143
      %1145 = vrot.lane.b32.xlu0 %v1109, 15
      %v1146 = vpop.permute.xlu0 %1145
      %1147 = vrot.lane.b32.xlu0 %v1111, 15
      %v1148 = vpop.permute.xlu0 %1147
      %1149 = vrot.lane.b32.xlu0 %v1114, 15
      %v1150 = vpop.permute.xlu0 %1149
      %1151 = vrot.lane.b32.xlu0 %v1116, 15
      %v1152 = vpop.permute.xlu0 %1151
      %1153 = vrot.lane.b32.xlu0 %v1119, 15
      %v1154 = vpop.permute.xlu0 %1153
      %1155 = vrot.lane.b32.xlu0 %v1121, 15
      %v1156 = vpop.permute.xlu0 %1155
      %1157 = vrot.lane.b32.xlu0 %v1124, 15
      %v1158 = vpop.permute.xlu0 %1157
      %1159 = vrot.lane.b32.xlu0 %v1126, 15
      %v1160 = vpop.permute.xlu0 %1159
      %1161 = vrot.lane.b32.xlu0 %v1129, 15
      %v1162 = vpop.permute.xlu0 %1161
      %1163 = vrot.lane.b32.xlu0 %v1131, 15
      %v1164 = vpop.permute.xlu0 %1163
      %1165 = vrot.lane.b32.xlu0 %v1134, 15
      %v1166 = vpop.permute.xlu0 %1165
      %1167 = vrot.lane.b32.xlu0 %v1136, 15
      %v1168 = vpop.permute.xlu0 %1167
      %v1201 = vunpack.c.l.b16 %v303
      %v1202 = vunpack.c.l.b16 %v304
      %v1203 = vunpack.c.l.b16 %v305
      %v1204 = vunpack.c.l.b16 %v306
      %v1205 = vunpack.c.l.b16 %v307
      %v1206 = vunpack.c.l.b16 %v308
      %v1207 = vunpack.c.l.b16 %v309
      %v1208 = vunpack.c.l.b16 %v310
      %v1209 = vunpack.c.l.b16 %v311
      %v1210 = vunpack.c.l.b16 %v312
      %v1211 = vunpack.c.l.b16 %v313
      %v1212 = vunpack.c.l.b16 %v314
      %v1213 = vunpack.c.l.b16 %v315
      %v1214 = vunpack.c.l.b16 %v316
      %v1215 = vunpack.c.l.b16 %v317
      %v1216 = vunpack.c.l.b16 %v318
      %v1217 = vunpack.c.l.b16 %v319
      %v1218 = vunpack.c.l.b16 %v320
      %v1219 = vunpack.c.l.b16 %v321
      %v1220 = vunpack.c.l.b16 %v322
      %v1221 = vunpack.c.l.b16 %v323
      %v1222 = vunpack.c.l.b16 %v324
      %v1223 = vunpack.c.l.b16 %v325
      %v1224 = vunpack.c.l.b16 %v326
      %v1225 = vunpack.c.l.b16 %v327
      %v1226 = vunpack.c.l.b16 %v328
      %v1227 = vunpack.c.l.b16 %v329
      %v1228 = vunpack.c.l.b16 %v330
      %v1229 = vunpack.c.l.b16 %v331
      %v1230 = vunpack.c.l.b16 %v332
      %v1231 = vunpack.c.l.b16 %v333
      %v1232 = vunpack.c.l.b16 %v334
      %v1233 = vpack.c.b16 %v1202, %v1201
      %v1234 = vpack.c.b16 %v1204, %v1203
      %v1235 = vpack.c.b16 %v1206, %v1205
      %v1236 = vpack.c.b16 %v1208, %v1207
      %v1237 = vpack.c.b16 %v1210, %v1209
      %v1238 = vpack.c.b16 %v1212, %v1211
      %v1239 = vpack.c.b16 %v1214, %v1213
      %v1240 = vpack.c.b16 %v1216, %v1215
      %v1241 = vpack.c.b16 %v1218, %v1217
      %v1242 = vpack.c.b16 %v1220, %v1219
      %v1243 = vpack.c.b16 %v1222, %v1221
      %v1244 = vpack.c.b16 %v1224, %v1223
      %v1245 = vpack.c.b16 %v1226, %v1225
      %v1246 = vpack.c.b16 %v1228, %v1227
      %v1247 = vpack.c.b16 %v1230, %v1229
      %v1248 = vpack.c.b16 %v1232, %v1231
      %1249 = vrot.lane.b32.xlu0 %v1233, 18
      %v1250 = vpop.permute.xlu0 %1249
      %1251 = vrot.lane.b32.xlu0 %v1234, 18
      %v1252 = vpop.permute.xlu0 %1251
      %1253 = vrot.lane.b32.xlu0 %v1235, 18
      %v1254 = vpop.permute.xlu0 %1253
      %1255 = vrot.lane.b32.xlu0 %v1236, 18
      %v1256 = vpop.permute.xlu0 %1255
      %1257 = vrot.lane.b32.xlu0 %v1237, 18
      %v1258 = vpop.permute.xlu0 %1257
      %1259 = vrot.lane.b32.xlu0 %v1238, 18
      %v1260 = vpop.permute.xlu0 %1259
      %1261 = vrot.lane.b32.xlu0 %v1239, 18
      %v1262 = vpop.permute.xlu0 %1261
      %1263 = vrot.lane.b32.xlu0 %v1240, 18
      %v1264 = vpop.permute.xlu0 %1263
      %1265 = vrot.lane.b32.xlu0 %v1241, 18
      %v1266 = vpop.permute.xlu0 %1265
      %1267 = vrot.lane.b32.xlu0 %v1242, 18
      %v1268 = vpop.permute.xlu0 %1267
      %1269 = vrot.lane.b32.xlu0 %v1243, 18
      %v1270 = vpop.permute.xlu0 %1269
      %1271 = vrot.lane.b32.xlu0 %v1244, 18
      %v1272 = vpop.permute.xlu0 %1271
      %1273 = vrot.lane.b32.xlu0 %v1245, 18
      %v1274 = vpop.permute.xlu0 %1273
      %1275 = vrot.lane.b32.xlu0 %v1246, 18
      %v1276 = vpop.permute.xlu0 %1275
      %1277 = vrot.lane.b32.xlu0 %v1247, 18
      %v1278 = vpop.permute.xlu0 %1277
      %1279 = vrot.lane.b32.xlu0 %v1248, 18
      %v1280 = vpop.permute.xlu0 %1279
      %v1289 = vunpack.c.l.b16 %v335
      %v1290 = vunpack.c.l.b16 %v336
      %v1291 = vunpack.c.l.b16 %v337
      %v1292 = vunpack.c.l.b16 %v338
      %v1293 = vunpack.c.l.b16 %v339
      %v1294 = vunpack.c.l.b16 %v340
      %v1295 = vunpack.c.l.b16 %v341
      %v1296 = vunpack.c.l.b16 %v342
      %v1297 = vpack.c.b16 %v1289, %v1289
      %v1298 = vpack.c.b16 %v1290, %v1290
      %v1299 = vpack.c.b16 %v1291, %v1291
      %v1300 = vpack.c.b16 %v1292, %v1292
      %v1301 = vpack.c.b16 %v1293, %v1293
      %v1302 = vpack.c.b16 %v1294, %v1294
      %v1303 = vpack.c.b16 %v1295, %v1295
      %v1304 = vpack.c.b16 %v1296, %v1296
      %v1306 = vshrl.u32 %v1233, 16
      %v1308 = vshll.u32 %v1233, 16
      %v1310 = vrot.slane %v1308, 1
      %v1311 = vor.u32 %v1306, %v1310
      %v1313 = vshll.u32 %v1234, 16
      %v1315 = vrot.slane %v1313, 1
      %v1316 = vsel %vm455, %v1311, %v1315
      %v1317 = vshrl.u32 %v1234, 16
      %v1319 = vor.u32 %v1317, %v1315
      %v1321 = vshll.u32 %v1297, 16
      %v1323 = vrot.slane %v1321, 1
      %v1324 = vsel %vm455, %v1319, %v1323
      %v1326 = vshrl.u32 %v1235, 16
      %v1328 = vshll.u32 %v1235, 16
      %v1330 = vrot.slane %v1328, 1
      %v1331 = vor.u32 %v1326, %v1330
      %v1333 = vshll.u32 %v1236, 16
      %v1335 = vrot.slane %v1333, 1
      %v1336 = vsel %vm455, %v1331, %v1335
      %v1337 = vshrl.u32 %v1236, 16
      %v1339 = vor.u32 %v1337, %v1335
      %v1341 = vshll.u32 %v1298, 16
      %v1343 = vrot.slane %v1341, 1
      %v1344 = vsel %vm455, %v1339, %v1343
      %v1346 = vshrl.u32 %v1237, 16
      %v1348 = vshll.u32 %v1237, 16
      %v1350 = vrot.slane %v1348, 1
      %v1351 = vor.u32 %v1346, %v1350
      %v1353 = vshll.u32 %v1238, 16
      %v1355 = vrot.slane %v1353, 1
      %v1356 = vsel %vm455, %v1351, %v1355
      %v1357 = vshrl.u32 %v1238, 16
      %v1359 = vor.u32 %v1357, %v1355
      %v1361 = vshll.u32 %v1299, 16
      %v1363 = vrot.slane %v1361, 1
      %v1364 = vsel %vm455, %v1359, %v1363
      %v1366 = vshrl.u32 %v1239, 16
      %v1368 = vshll.u32 %v1239, 16
      %v1370 = vrot.slane %v1368, 1
      %v1371 = vor.u32 %v1366, %v1370
      %v1373 = vshll.u32 %v1240, 16
      %v1375 = vrot.slane %v1373, 1
      %v1376 = vsel %vm455, %v1371, %v1375
      %v1377 = vshrl.u32 %v1240, 16
      %v1379 = vor.u32 %v1377, %v1375
      %v1381 = vshll.u32 %v1300, 16
      %v1383 = vrot.slane %v1381, 1
      %v1384 = vsel %vm455, %v1379, %v1383
      %v1386 = vshrl.u32 %v1241, 16
      %v1388 = vshll.u32 %v1241, 16
      %v1390 = vrot.slane %v1388, 1
      %v1391 = vor.u32 %v1386, %v1390
      %v1393 = vshll.u32 %v1242, 16
      %v1395 = vrot.slane %v1393, 1
      %v1396 = vsel %vm455, %v1391, %v1395
      %v1397 = vshrl.u32 %v1242, 16
      %v1399 = vor.u32 %v1397, %v1395
      %v1401 = vshll.u32 %v1301, 16
      %v1403 = vrot.slane %v1401, 1
      %v1404 = vsel %vm455, %v1399, %v1403
      %v1406 = vshrl.u32 %v1243, 16
      %v1408 = vshll.u32 %v1243, 16
      %v1410 = vrot.slane %v1408, 1
      %v1411 = vor.u32 %v1406, %v1410
      %v1413 = vshll.u32 %v1244, 16
      %v1415 = vrot.slane %v1413, 1
      %v1416 = vsel %vm455, %v1411, %v1415
      %v1417 = vshrl.u32 %v1244, 16
      %v1419 = vor.u32 %v1417, %v1415
      %v1421 = vshll.u32 %v1302, 16
      %v1423 = vrot.slane %v1421, 1
      %v1424 = vsel %vm455, %v1419, %v1423
      %v1426 = vshrl.u32 %v1245, 16
      %v1428 = vshll.u32 %v1245, 16
      %v1430 = vrot.slane %v1428, 1
      %v1431 = vor.u32 %v1426, %v1430
      %v1433 = vshll.u32 %v1246, 16
      %v1435 = vrot.slane %v1433, 1
      %v1436 = vsel %vm455, %v1431, %v1435
      %v1437 = vshrl.u32 %v1246, 16
      %v1439 = vor.u32 %v1437, %v1435
      %v1441 = vshll.u32 %v1303, 16
      %v1443 = vrot.slane %v1441, 1
      %v1444 = vsel %vm455, %v1439, %v1443
      %v1446 = vshrl.u32 %v1247, 16
      %v1448 = vshll.u32 %v1247, 16
      %v1450 = vrot.slane %v1448, 1
      %v1451 = vor.u32 %v1446, %v1450
      %v1453 = vshll.u32 %v1248, 16
      %v1455 = vrot.slane %v1453, 1
      %v1456 = vsel %vm455, %v1451, %v1455
      %v1457 = vshrl.u32 %v1248, 16
      %v1459 = vor.u32 %v1457, %v1455
      %v1461 = vshll.u32 %v1304, 16
      %v1463 = vrot.slane %v1461, 1
      %v1464 = vsel %vm455, %v1459, %v1463
      %1465 = vrot.lane.b32.xlu0 %v1316, 21
      %v1466 = vpop.permute.xlu0 %1465
      %1467 = vrot.lane.b32.xlu0 %v1324, 21
      %v1468 = vpop.permute.xlu0 %1467
      %1469 = vrot.lane.b32.xlu0 %v1336, 21
      %v1470 = vpop.permute.xlu0 %1469
      %1471 = vrot.lane.b32.xlu0 %v1344, 21
      %v1472 = vpop.permute.xlu0 %1471
      %1473 = vrot.lane.b32.xlu0 %v1356, 21
      %v1474 = vpop.permute.xlu0 %1473
      %1475 = vrot.lane.b32.xlu0 %v1364, 21
      %v1476 = vpop.permute.xlu0 %1475
      %1477 = vrot.lane.b32.xlu0 %v1376, 21
      %v1478 = vpop.permute.xlu0 %1477
      %1479 = vrot.lane.b32.xlu0 %v1384, 21
      %v1480 = vpop.permute.xlu0 %1479
      %1481 = vrot.lane.b32.xlu0 %v1396, 21
      %v1482 = vpop.permute.xlu0 %1481
      %1483 = vrot.lane.b32.xlu0 %v1404, 21
      %v1484 = vpop.permute.xlu0 %1483
      %1485 = vrot.lane.b32.xlu0 %v1416, 21
      %v1486 = vpop.permute.xlu0 %1485
      %1487 = vrot.lane.b32.xlu0 %v1424, 21
      %v1488 = vpop.permute.xlu0 %1487
      %1489 = vrot.lane.b32.xlu0 %v1436, 21
      %v1490 = vpop.permute.xlu0 %1489
      %1491 = vrot.lane.b32.xlu0 %v1444, 21
      %v1492 = vpop.permute.xlu0 %1491
      %1493 = vrot.lane.b32.xlu0 %v1456, 21
      %v1494 = vpop.permute.xlu0 %1493
      %1495 = vrot.lane.b32.xlu0 %v1464, 21
      %v1496 = vpop.permute.xlu0 %1495
      %v1505 = vunpack.c.l.b16 %v343
      %v1506 = vunpack.c.l.b16 %v344
      %v1507 = vunpack.c.l.b16 %v345
      %v1508 = vunpack.c.l.b16 %v346
      %v1509 = vunpack.c.l.b16 %v347
      %v1510 = vunpack.c.l.b16 %v348
      %v1511 = vunpack.c.l.b16 %v349
      %v1512 = vunpack.c.l.b16 %v350
      %v1513 = vpack.c.b16 %v1202, %v1505
      %v1514 = vpack.c.b16 %v1206, %v1506
      %v1515 = vpack.c.b16 %v1210, %v1507
      %v1516 = vpack.c.b16 %v1214, %v1508
      %v1517 = vpack.c.b16 %v1218, %v1509
      %v1518 = vpack.c.b16 %v1222, %v1510
      %v1519 = vpack.c.b16 %v1226, %v1511
      %v1520 = vpack.c.b16 %v1230, %v1512
      %v1521 = vrot.slane %v1513, 1
      %v1522 = vrot.slane %v1234, 1
      %v1523 = vsel %vm672, %v1521, %v1522
      %v1524 = vrot.slane %v1297, 1
      %v1525 = vsel %vm672, %v1522, %v1524
      %v1526 = vrot.slane %v1514, 1
      %v1527 = vrot.slane %v1236, 1
      %v1528 = vsel %vm672, %v1526, %v1527
      %v1529 = vrot.slane %v1298, 1
      %v1530 = vsel %vm672, %v1527, %v1529
      %v1531 = vrot.slane %v1515, 1
      %v1532 = vrot.slane %v1238, 1
      %v1533 = vsel %vm672, %v1531, %v1532
      %v1534 = vrot.slane %v1299, 1
      %v1535 = vsel %vm672, %v1532, %v1534
      %v1536 = vrot.slane %v1516, 1
      %v1537 = vrot.slane %v1240, 1
      %v1538 = vsel %vm672, %v1536, %v1537
      %v1539 = vrot.slane %v1300, 1
      %v1540 = vsel %vm672, %v1537, %v1539
      %v1541 = vrot.slane %v1517, 1
      %v1542 = vrot.slane %v1242, 1
      %v1543 = vsel %vm672, %v1541, %v1542
      %v1544 = vrot.slane %v1301, 1
      %v1545 = vsel %vm672, %v1542, %v1544
      %v1546 = vrot.slane %v1518, 1
      %v1547 = vrot.slane %v1244, 1
      %v1548 = vsel %vm672, %v1546, %v1547
      %v1549 = vrot.slane %v1302, 1
      %v1550 = vsel %vm672, %v1547, %v1549
      %v1551 = vrot.slane %v1519, 1
      %v1552 = vrot.slane %v1246, 1
      %v1553 = vsel %vm672, %v1551, %v1552
      %v1554 = vrot.slane %v1303, 1
      %v1555 = vsel %vm672, %v1552, %v1554
      %v1556 = vrot.slane %v1520, 1
      %v1557 = vrot.slane %v1248, 1
      %v1558 = vsel %vm672, %v1556, %v1557
      %v1559 = vrot.slane %v1304, 1
      %v1560 = vsel %vm672, %v1557, %v1559
      %1561 = vrot.lane.b32.xlu0 %v1523, 24
      %v1562 = vpop.permute.xlu0 %1561
      %1563 = vrot.lane.b32.xlu0 %v1525, 24
      %v1564 = vpop.permute.xlu0 %1563
      %1565 = vrot.lane.b32.xlu0 %v1528, 24
      %v1566 = vpop.permute.xlu0 %1565
      %1567 = vrot.lane.b32.xlu0 %v1530, 24
      %v1568 = vpop.permute.xlu0 %1567
      %1569 = vrot.lane.b32.xlu0 %v1533, 24
      %v1570 = vpop.permute.xlu0 %1569
      %1571 = vrot.lane.b32.xlu0 %v1535, 24
      %v1572 = vpop.permute.xlu0 %1571
      %1573 = vrot.lane.b32.xlu0 %v1538, 24
      %v1574 = vpop.permute.xlu0 %1573
      %1575 = vrot.lane.b32.xlu0 %v1540, 24
      %v1576 = vpop.permute.xlu0 %1575
      %1577 = vrot.lane.b32.xlu0 %v1543, 24
      %v1578 = vpop.permute.xlu0 %1577
      %1579 = vrot.lane.b32.xlu0 %v1545, 24
      %v1580 = vpop.permute.xlu0 %1579
      %1581 = vrot.lane.b32.xlu0 %v1548, 24
      %v1582 = vpop.permute.xlu0 %1581
      %1583 = vrot.lane.b32.xlu0 %v1550, 24
      %v1584 = vpop.permute.xlu0 %1583
      %1585 = vrot.lane.b32.xlu0 %v1553, 24
      %v1586 = vpop.permute.xlu0 %1585
      %1587 = vrot.lane.b32.xlu0 %v1555, 24
      %v1588 = vpop.permute.xlu0 %1587
      %1589 = vrot.lane.b32.xlu0 %v1558, 24
      %v1590 = vpop.permute.xlu0 %1589
      %1591 = vrot.lane.b32.xlu0 %v1560, 24
      %v1592 = vpop.permute.xlu0 %1591
      %vm1593 = vcmask 23552
      %v1595 = vsel %vm1593, %v415, %v617
      %v1597 = vsel %vm1593, %v416, %v619
      %v1599 = vsel %vm1593, %v417, %v621
      %v1601 = vsel %vm1593, %v418, %v623
      %v1603 = vsel %vm1593, %v419, %v625
      %v1605 = vsel %vm1593, %v420, %v627
      %v1607 = vsel %vm1593, %v421, %v629
      %v1609 = vsel %vm1593, %v422, %v631
      %v1611 = vsel %vm1593, %v423, %v633
      %v1613 = vsel %vm1593, %v424, %v635
      %v1615 = vsel %vm1593, %v425, %v637
      %v1617 = vsel %vm1593, %v426, %v639
      %v1619 = vsel %vm1593, %v427, %v641
      %v1621 = vsel %vm1593, %v428, %v643
      %v1623 = vsel %vm1593, %v429, %v645
      %v1625 = vsel %vm1593, %v430, %v647
      %vm1626 = vcmask 48128
      %v1628 = vsel %vm1626, %v1595, %v714
      %v1630 = vsel %vm1626, %v1597, %v716
      %v1632 = vsel %vm1626, %v1599, %v718
      %v1634 = vsel %vm1626, %v1601, %v720
      %v1636 = vsel %vm1626, %v1603, %v722
      %v1638 = vsel %vm1626, %v1605, %v724
      %v1640 = vsel %vm1626, %v1607, %v726
      %v1642 = vsel %vm1626, %v1609, %v728
      %v1644 = vsel %vm1626, %v1611, %v730
      %v1646 = vsel %vm1626, %v1613, %v732
      %v1648 = vsel %vm1626, %v1615, %v734
      %v1650 = vsel %vm1626, %v1617, %v736
      %v1652 = vsel %vm1626, %v1619, %v738
      %v1654 = vsel %vm1626, %v1621, %v740
      %v1656 = vsel %vm1626, %v1623, %v742
      %v1658 = vsel %vm1626, %v1625, %v744
      %vm1659 = vcmask 72704
      %v1661 = vsel %vm1659, %v1628, %v826
      %v1663 = vsel %vm1659, %v1630, %v828
      %v1665 = vsel %vm1659, %v1632, %v830
      %v1667 = vsel %vm1659, %v1634, %v832
      %v1669 = vsel %vm1659, %v1636, %v834
      %v1671 = vsel %vm1659, %v1638, %v836
      %v1673 = vsel %vm1659, %v1640, %v838
      %v1675 = vsel %vm1659, %v1642, %v840
      %v1677 = vsel %vm1659, %v1644, %v842
      %v1679 = vsel %vm1659, %v1646, %v844
      %v1681 = vsel %vm1659, %v1648, %v846
      %v1683 = vsel %vm1659, %v1650, %v848
      %v1685 = vsel %vm1659, %v1652, %v850
      %v1687 = vsel %vm1659, %v1654, %v852
      %v1689 = vsel %vm1659, %v1656, %v854
      %v1691 = vsel %vm1659, %v1658, %v856
      %vm1692 = vcmask 97280
      %v1694 = vsel %vm1692, %v1661, %v1042
      %v1696 = vsel %vm1692, %v1663, %v1044
      %v1698 = vsel %vm1692, %v1665, %v1046
      %v1700 = vsel %vm1692, %v1667, %v1048
      %v1702 = vsel %vm1692, %v1669, %v1050
      %v1704 = vsel %vm1692, %v1671, %v1052
      %v1706 = vsel %vm1692, %v1673, %v1054
      %v1708 = vsel %vm1692, %v1675, %v1056
      %v1710 = vsel %vm1692, %v1677, %v1058
      %v1712 = vsel %vm1692, %v1679, %v1060
      %v1714 = vsel %vm1692, %v1681, %v1062
      %v1716 = vsel %vm1692, %v1683, %v1064
      %v1718 = vsel %vm1692, %v1685, %v1066
      %v1720 = vsel %vm1692, %v1687, %v1068
      %v1722 = vsel %vm1692, %v1689, %v1070
      %v1724 = vsel %vm1692, %v1691, %v1072
      %vm1725 = vcmask 121856
      %v1727 = vsel %vm1725, %v1694, %v1138
      %v1729 = vsel %vm1725, %v1696, %v1140
      %v1731 = vsel %vm1725, %v1698, %v1142
      %v1733 = vsel %vm1725, %v1700, %v1144
      %v1735 = vsel %vm1725, %v1702, %v1146
      %v1737 = vsel %vm1725, %v1704, %v1148
      %v1739 = vsel %vm1725, %v1706, %v1150
      %v1741 = vsel %vm1725, %v1708, %v1152
      %v1743 = vsel %vm1725, %v1710, %v1154
      %v1745 = vsel %vm1725, %v1712, %v1156
      %v1747 = vsel %vm1725, %v1714, %v1158
      %v1749 = vsel %vm1725, %v1716, %v1160
      %v1751 = vsel %vm1725, %v1718, %v1162
      %v1753 = vsel %vm1725, %v1720, %v1164
      %v1755 = vsel %vm1725, %v1722, %v1166
      %v1757 = vsel %vm1725, %v1724, %v1168
      %vm1758 = vcmask 146432
      %v1760 = vsel %vm1758, %v1727, %v1250
      %v1762 = vsel %vm1758, %v1729, %v1252
      %v1764 = vsel %vm1758, %v1731, %v1254
      %v1766 = vsel %vm1758, %v1733, %v1256
      %v1768 = vsel %vm1758, %v1735, %v1258
      %v1770 = vsel %vm1758, %v1737, %v1260
      %v1772 = vsel %vm1758, %v1739, %v1262
      %v1774 = vsel %vm1758, %v1741, %v1264
      %v1776 = vsel %vm1758, %v1743, %v1266
      %v1778 = vsel %vm1758, %v1745, %v1268
      %v1780 = vsel %vm1758, %v1747, %v1270
      %v1782 = vsel %vm1758, %v1749, %v1272
      %v1784 = vsel %vm1758, %v1751, %v1274
      %v1786 = vsel %vm1758, %v1753, %v1276
      %v1788 = vsel %vm1758, %v1755, %v1278
      %v1790 = vsel %vm1758, %v1757, %v1280
      %vm1791 = vcmask 171008
      %v1793 = vsel %vm1791, %v1760, %v1466
      %v1795 = vsel %vm1791, %v1762, %v1468
      %v1797 = vsel %vm1791, %v1764, %v1470
      %v1799 = vsel %vm1791, %v1766, %v1472
      %v1801 = vsel %vm1791, %v1768, %v1474
      %v1803 = vsel %vm1791, %v1770, %v1476
      %v1805 = vsel %vm1791, %v1772, %v1478
      %v1807 = vsel %vm1791, %v1774, %v1480
      %v1809 = vsel %vm1791, %v1776, %v1482
      %v1811 = vsel %vm1791, %v1778, %v1484
      %v1813 = vsel %vm1791, %v1780, %v1486
      %v1815 = vsel %vm1791, %v1782, %v1488
      %v1817 = vsel %vm1791, %v1784, %v1490
      %v1819 = vsel %vm1791, %v1786, %v1492
      %v1821 = vsel %vm1791, %v1788, %v1494
      %v1823 = vsel %vm1791, %v1790, %v1496
      %vm1824 = vcmask 195584
      %v1826 = vsel %vm1824, %v1793, %v1562
      %v1828 = vsel %vm1824, %v1795, %v1564
      %v1830 = vsel %vm1824, %v1797, %v1566
      %v1832 = vsel %vm1824, %v1799, %v1568
      %v1834 = vsel %vm1824, %v1801, %v1570
      %v1836 = vsel %vm1824, %v1803, %v1572
      %v1838 = vsel %vm1824, %v1805, %v1574
      %v1840 = vsel %vm1824, %v1807, %v1576
      %v1842 = vsel %vm1824, %v1809, %v1578
      %v1844 = vsel %vm1824, %v1811, %v1580
      %v1846 = vsel %vm1824, %v1813, %v1582
      %v1848 = vsel %vm1824, %v1815, %v1584
      %v1850 = vsel %vm1824, %v1817, %v1586
      %v1852 = vsel %vm1824, %v1819, %v1588
      %v1854 = vsel %vm1824, %v1821, %v1590
      %v1856 = vsel %vm1824, %v1823, %v1592
      %v1857 = vld [vmem:[%s1] sm:$0xf]
      %v1858 = vld [vmem:[%s1 + $0x4] sm:$0xf]
      %v1859 = vld [vmem:[%s1 + $0x8] sm:$0xf]
      %v1860 = vld [vmem:[%s1 + $0xc] sm:$0x3]
      %v1861 = vld [vmem:[%s2] sm:$0x1]
      %v1863 = vperm.slane %v1861, 0
      %v1869 = vunpack.c.l.b16 %v1857
      %v1870 = vunpack.c.l.b16 %v1858
      %v1871 = vunpack.c.l.b16 %v1859
      %v1872 = vunpack.c.l.b16 %v1860
      %v1873 = vpack.c.b16 %v1870, %v1869
      %v1874 = vpack.c.b16 %v1872, %v1871
      %vm1876 = vcmask 220160
      %v1877 = vsel %vm1876, %v1826, 0
      %v1879 = vsel %vm1876, %v1828, 0
      %v1881 = vsel %vm1876, %v1830, 0
      %v1883 = vsel %vm1876, %v1832, 0
      %v1885 = vsel %vm1876, %v1834, 0
      %v1887 = vsel %vm1876, %v1836, 0
      %v1889 = vsel %vm1876, %v1838, 0
      %v1891 = vsel %vm1876, %v1840, 0
      %v1893 = vsel %vm1876, %v1842, 0
      %v1895 = vsel %vm1876, %v1844, 0
      %v1897 = vsel %vm1876, %v1846, 0
      %v1899 = vsel %vm1876, %v1848, 0
      %v1901 = vsel %vm1876, %v1850, 0
      %v1903 = vsel %vm1876, %v1852, 0
      %v1905 = vsel %vm1876, %v1854, 0
      %v1907 = vsel %vm1876, %v1856, 0
      %vm1909 = vcmask 1044480
      %vm1910 = vcmask 1045504
      %v1911 = vsel %vm1909, 4294967295, 65535
      %v1912 = vsel %vm1910, %v1911, 0
      %v1914 = vand.u32 %v1874, %v1912
      %1916 = vmatpush.bf16.msra.mxu0 0
      %1917 = vmatpush.bf16.msra.mxu0 0
      %1918 = vmatpush.bf16.msra.mxu0 0
      %1919 = vmatpush.bf16.msra.mxu0 0
      %1920 = vmatpush.bf16.msra.mxu0 0
      %1921 = vmatpush.bf16.msra.mxu0 0
      %1922 = vmatpush.bf16.msra.mxu0 %v1914
      %1923 = vmatpush.bf16.msra.mxu0 %v1873
      %1924 = vmatmul.bf16.gmra.mxu0 %v1877
      %v1925 = vpop.f32.mrf.mxu0
      %v1926 = vadd.f32 %v1863, %v1925
      %v1927 = vpop.f32.mrf.mxu0
      %v1928 = vadd.f32 %v1863, %v1927
      %1929 = vmatmul.bf16.gmra.mxu0 %v1879
      %v1930 = vpop.f32.mrf.mxu0
      %v1931 = vadd.f32 %v1863, %v1930
      %v1932 = vpop.f32.mrf.mxu0
      %v1933 = vadd.f32 %v1863, %v1932
      %1934 = vmatmul.bf16.gmra.mxu0 %v1881
      %v1935 = vpop.f32.mrf.mxu0
      %v1936 = vadd.f32 %v1863, %v1935
      %v1937 = vpop.f32.mrf.mxu0
      %v1938 = vadd.f32 %v1863, %v1937
      %1939 = vmatmul.bf16.gmra.mxu0 %v1883
      %v1940 = vpop.f32.mrf.mxu0
      %v1941 = vadd.f32 %v1863, %v1940
      %v1942 = vpop.f32.mrf.mxu0
      %v1943 = vadd.f32 %v1863, %v1942
      %1944 = vmatmul.bf16.gmra.mxu0 %v1885
      %v1945 = vpop.f32.mrf.mxu0
      %v1946 = vadd.f32 %v1863, %v1945
      %v1947 = vpop.f32.mrf.mxu0
      %v1948 = vadd.f32 %v1863, %v1947
      %1949 = vmatmul.bf16.gmra.mxu0 %v1887
      %v1950 = vpop.f32.mrf.mxu0
      %v1951 = vadd.f32 %v1863, %v1950
      %v1952 = vpop.f32.mrf.mxu0
      %v1953 = vadd.f32 %v1863, %v1952
      %1954 = vmatmul.bf16.gmra.mxu0 %v1889
      %v1955 = vpop.f32.mrf.mxu0
      %v1956 = vadd.f32 %v1863, %v1955
      %v1957 = vpop.f32.mrf.mxu0
      %v1958 = vadd.f32 %v1863, %v1957
      %1959 = vmatmul.bf16.gmra.mxu0 %v1891
      %v1960 = vpop.f32.mrf.mxu0
      %v1961 = vadd.f32 %v1863, %v1960
      %v1962 = vpop.f32.mrf.mxu0
      %v1963 = vadd.f32 %v1863, %v1962
      %1964 = vmatmul.bf16.gmra.mxu0 %v1893
      %v1965 = vpop.f32.mrf.mxu0
      %v1966 = vadd.f32 %v1863, %v1965
      %v1967 = vpop.f32.mrf.mxu0
      %v1968 = vadd.f32 %v1863, %v1967
      %1969 = vmatmul.bf16.gmra.mxu0 %v1895
      %v1970 = vpop.f32.mrf.mxu0
      %v1971 = vadd.f32 %v1863, %v1970
      %v1972 = vpop.f32.mrf.mxu0
      %v1973 = vadd.f32 %v1863, %v1972
      %1974 = vmatmul.bf16.gmra.mxu0 %v1897
      %v1975 = vpop.f32.mrf.mxu0
      %v1976 = vadd.f32 %v1863, %v1975
      %v1977 = vpop.f32.mrf.mxu0
      %v1978 = vadd.f32 %v1863, %v1977
      %1979 = vmatmul.bf16.gmra.mxu0 %v1899
      %v1980 = vpop.f32.mrf.mxu0
      %v1981 = vadd.f32 %v1863, %v1980
      %v1982 = vpop.f32.mrf.mxu0
      %v1983 = vadd.f32 %v1863, %v1982
      %1984 = vmatmul.bf16.gmra.mxu0 %v1901
      %v1985 = vpop.f32.mrf.mxu0
      %v1986 = vadd.f32 %v1863, %v1985
      %v1987 = vpop.f32.mrf.mxu0
      %v1988 = vadd.f32 %v1863, %v1987
      %1989 = vmatmul.bf16.gmra.mxu0 %v1903
      %v1990 = vpop.f32.mrf.mxu0
      %v1991 = vadd.f32 %v1863, %v1990
      %v1992 = vpop.f32.mrf.mxu0
      %v1993 = vadd.f32 %v1863, %v1992
      %1994 = vmatmul.bf16.gmra.mxu0 %v1905
      %v1995 = vpop.f32.mrf.mxu0
      %v1996 = vadd.f32 %v1863, %v1995
      %v1997 = vpop.f32.mrf.mxu0
      %v1998 = vadd.f32 %v1863, %v1997
      %1999 = vmatmul.bf16.gmra.mxu0 %v1907
      %v2000 = vpop.f32.mrf.mxu0
      %v2001 = vadd.f32 %v1863, %v2000
      %v2002 = vpop.f32.mrf.mxu0
      %v2003 = vadd.f32 %v1863, %v2002
      %2004 = vdwg.mxu0
      %v2005 = vmax.f32 %v1926, 0.0
      %v2006 = vmax.f32 %v1928, 0.0
      %v2007 = vmax.f32 %v1931, 0.0
      %v2008 = vmax.f32 %v1933, 0.0
      %v2009 = vmax.f32 %v1936, 0.0
      %v2010 = vmax.f32 %v1938, 0.0
      %v2011 = vmax.f32 %v1941, 0.0
      %v2012 = vmax.f32 %v1943, 0.0
      %v2013 = vmax.f32 %v1946, 0.0
      %v2014 = vmax.f32 %v1948, 0.0
      %v2015 = vmax.f32 %v1951, 0.0
      %v2016 = vmax.f32 %v1953, 0.0
      %v2017 = vmax.f32 %v1956, 0.0
      %v2018 = vmax.f32 %v1958, 0.0
      %v2019 = vmax.f32 %v1961, 0.0
      %v2020 = vmax.f32 %v1963, 0.0
      %v2021 = vmax.f32 %v1966, 0.0
      %v2022 = vmax.f32 %v1968, 0.0
      %v2023 = vmax.f32 %v1971, 0.0
      %v2024 = vmax.f32 %v1973, 0.0
      %v2025 = vmax.f32 %v1976, 0.0
      %v2026 = vmax.f32 %v1978, 0.0
      %v2027 = vmax.f32 %v1981, 0.0
      %v2028 = vmax.f32 %v1983, 0.0
      %v2029 = vmax.f32 %v1986, 0.0
      %v2030 = vmax.f32 %v1988, 0.0
      %v2031 = vmax.f32 %v1991, 0.0
      %v2032 = vmax.f32 %v1993, 0.0
      %v2033 = vmax.f32 %v1996, 0.0
      %v2034 = vmax.f32 %v1998, 0.0
      %v2035 = vmax.f32 %v2001, 0.0
      %v2036 = vmax.f32 %v2003, 0.0
      %v2037 = vpack.c.bf16 %v2005, %v2005
      %v2038 = vpack.c.bf16 %v2006, %v2006
      %v2039 = vpack.c.bf16 %v2007, %v2007
      %v2040 = vpack.c.bf16 %v2008, %v2008
      %v2041 = vpack.c.bf16 %v2009, %v2009
      %v2042 = vpack.c.bf16 %v2010, %v2010
      %v2043 = vpack.c.bf16 %v2011, %v2011
      %v2044 = vpack.c.bf16 %v2012, %v2012
      %v2045 = vpack.c.bf16 %v2013, %v2013
      %v2046 = vpack.c.bf16 %v2014, %v2014
      %v2047 = vpack.c.bf16 %v2015, %v2015
      %v2048 = vpack.c.bf16 %v2016, %v2016
      %v2049 = vpack.c.bf16 %v2017, %v2017
      %v2050 = vpack.c.bf16 %v2018, %v2018
      %v2051 = vpack.c.bf16 %v2019, %v2019
      %v2052 = vpack.c.bf16 %v2020, %v2020
      %v2053 = vpack.c.bf16 %v2021, %v2021
      %v2054 = vpack.c.bf16 %v2022, %v2022
      %v2055 = vpack.c.bf16 %v2023, %v2023
      %v2056 = vpack.c.bf16 %v2024, %v2024
      %v2057 = vpack.c.bf16 %v2025, %v2025
      %v2058 = vpack.c.bf16 %v2026, %v2026
      %v2059 = vpack.c.bf16 %v2027, %v2027
      %v2060 = vpack.c.bf16 %v2028, %v2028
      %v2061 = vpack.c.bf16 %v2029, %v2029
      %v2062 = vpack.c.bf16 %v2030, %v2030
      %v2063 = vpack.c.bf16 %v2031, %v2031
      %v2064 = vpack.c.bf16 %v2032, %v2032
      %v2065 = vpack.c.bf16 %v2033, %v2033
      %v2066 = vpack.c.bf16 %v2034, %v2034
      %v2067 = vpack.c.bf16 %v2035, %v2035
      %v2068 = vpack.c.bf16 %v2036, %v2036
      %vm2069 = vcmask 519168
      %2070 = vst.msk [vmem:[%s192] sm:$0xf] %vm2069, %v2037
      %2071 = vst.msk [vmem:[%s192 + $0x4] sm:$0xf] %vm2069, %v2038
      %2072 = vst.msk [vmem:[%s192 + $0x8] sm:$0xf] %vm2069, %v2039
      %2073 = vst.msk [vmem:[%s192 + $0xc] sm:$0xf] %vm2069, %v2040
      %2074 = vst.msk [vmem:[%s192 + $0x10] sm:$0xf] %vm2069, %v2041
      %2075 = vst.msk [vmem:[%s192 + $0x14] sm:$0xf] %vm2069, %v2042
      %2076 = vst.msk [vmem:[%s192 + $0x18] sm:$0xf] %vm2069, %v2043
      %2077 = vst.msk [vmem:[%s192 + $0x1c] sm:$0xf] %vm2069, %v2044
      %2078 = vst.msk [vmem:[%s192 + $0x20] sm:$0xf] %vm2069, %v2045
      %2079 = vst.msk [vmem:[%s192 + $0x24] sm:$0xf] %vm2069, %v2046
      %2080 = vst.msk [vmem:[%s192 + $0x28] sm:$0xf] %vm2069, %v2047
      %2081 = vst.msk [vmem:[%s192 + $0x2c] sm:$0xf] %vm2069, %v2048
      %2082 = vst.msk [vmem:[%s192 + $0x30] sm:$0xf] %vm2069, %v2049
      %2083 = vst.msk [vmem:[%s192 + $0x34] sm:$0xf] %vm2069, %v2050
      %2084 = vst.msk [vmem:[%s192 + $0x38] sm:$0xf] %vm2069, %v2051
      %2085 = vst.msk [vmem:[%s192 + $0x3c] sm:$0xf] %vm2069, %v2052
      %2086 = vst.msk [vmem:[%s192 + $0x40] sm:$0xf] %vm2069, %v2053
      %2087 = vst.msk [vmem:[%s192 + $0x44] sm:$0xf] %vm2069, %v2054
      %2088 = vst.msk [vmem:[%s192 + $0x48] sm:$0xf] %vm2069, %v2055
      %2089 = vst.msk [vmem:[%s192 + $0x4c] sm:$0xf] %vm2069, %v2056
      %2090 = vst.msk [vmem:[%s192 + $0x50] sm:$0xf] %vm2069, %v2057
      %2091 = vst.msk [vmem:[%s192 + $0x54] sm:$0xf] %vm2069, %v2058
      %2092 = vst.msk [vmem:[%s192 + $0x58] sm:$0xf] %vm2069, %v2059
      %2093 = vst.msk [vmem:[%s192 + $0x5c] sm:$0xf] %vm2069, %v2060
      %2094 = vst.msk [vmem:[%s192 + $0x60] sm:$0xf] %vm2069, %v2061
      %2095 = vst.msk [vmem:[%s192 + $0x64] sm:$0xf] %vm2069, %v2062
      %2096 = vst.msk [vmem:[%s192 + $0x68] sm:$0xf] %vm2069, %v2063
      %2097 = vst.msk [vmem:[%s192 + $0x6c] sm:$0xf] %vm2069, %v2064
      %2098 = vst.msk [vmem:[%s192 + $0x70] sm:$0xf] %vm2069, %v2065
      %2099 = vst.msk [vmem:[%s192 + $0x74] sm:$0xf] %vm2069, %v2066
      %2100 = vst.msk [vmem:[%s192 + $0x78] sm:$0xf] %vm2069, %v2067
      %2101 = vst.msk [vmem:[%s192 + $0x7c] sm:$0xf] %vm2069, %v2068
      %s2102 = smul.u32 32, %s19
      %p2103 = scmp.lt.s32.totalorder %s18, 1
      %s2104 = scalar_select %p2103, %s18, 1
      %p2105 = scmp.lt.s32.totalorder %s2102, 127
      %s2106 = scalar_select %p2105, %s2102, 127
      %s2107 = smul.addr %s2104, 128
      %s2108 = sadd.s32 %s2106, %s2107
      %s2109 = smul.addr %s2108, 4
      %s2110 = scalar_lea.vmem %s3, %s2109
      // Predicated region
      $region33: #{tpu_custom_call.1} parent=31 // pred_check
        %p2111 = pneg %p114
      $region34: #{tpu_custom_call.1} parent=31 // pred_check_branch
        %2113 = sbr.rel (%p2111) target = $region36
      $region35: #{tpu_custom_call.1} parent=31 // pred_region
        %s2114 = smul.u32 32, %s19
      $region36: #{tpu_custom_call.1} parent=31 // pred_fallthru
        _
    $region32: #{tpu_custom_call.1} parent=5 // pred_fallthru
      _
    %p2115 = scmp.le.s32.totalorder 2, %s9
    // Predicated region
    $region37: #{tpu_custom_call.1} parent=5 // pred_check
      %p2116 = pneg %p2115
    $region38: #{tpu_custom_call.1} parent=5 // pred_check_branch
      %2118 = sbr.rel (%p2116) target = $region40
    $region39: #{tpu_custom_call.1} parent=5 // pred_region
      %s2119 = ssub.s32 %s9, 2
      // Predicated region
      $region41: #{tpu_custom_call.1} parent=39 // pred_check
        %p2120 = pneg %p120
      $region42: #{tpu_custom_call.1} parent=39 // pred_check_branch
        %2122 = sbr.rel (%p2120) target = $region44
      $region43: #{tpu_custom_call.1} parent=39 // pred_region
        %s2123 = smul.u32 32, %s21
        %p2124 = scmp.lt.s32.totalorder %s20, 1
        %s2125 = scalar_select %p2124, %s20, 1
        %p2126 = scmp.lt.s32.totalorder %s2123, 127
        %s2127 = scalar_select %p2126, %s2123, 127
        %s2128 = smul.addr %s2125, 128
        %s2129 = sadd.s32 %s2127, %s2128
        %s2130 = smul.addr %s2129, 4
        %s2131 = scalar_lea.vmem %s3, %s2130
      $region44: #{tpu_custom_call.1} parent=39 // pred_fallthru
        _
    $region40: #{tpu_custom_call.1} parent=5 // pred_fallthru
      _
  $region6: #{tpu_custom_call.1} parent=0 // loop_footer
    %s13 = sadd.s32 1, %s9
  $region7: #{tpu_custom_call.1} parent=0 // loop_footer_branch
    %8 = sbr.rel target = $region3
  $region8: #{tpu_custom_call.1} parent=0 // loop_exit
    _

</llo_original>
